<compile_context>
chip_gen: v7x
topology: tpu7x:2x2x1
jax: 0.10.0
libtpu: 0.0.40
codegen_flags: <defaults>
</compile_context>

<pallas_src>
import jax
import jax.numpy as jnp
import numpy as np
from jax import lax
from jax.experimental import pallas as pl
from jax.experimental.pallas import tpu as pltpu

EPS = 1e-5
PAD_TOP = 8   # activation rows live at [PAD_TOP, PAD_TOP+H) in the H-padded
              # scratch so inter-layer stores are sublane-tile aligned; the
              # zero padding row needed above the image sits at PAD_TOP-1.


# ----------------------------- fused kernel -----------------------------
def _make_quad_kernel(N, H, W, Cin, Cout, K, n_layers):
    assert K == 3, "written for the module default kernel_size=3 (padding=1)"
    M = N * H
    WCin, WCout = W * Cin, W * Cout
    inv_count = 1.0 / (N * H * W)

    def kernel(x_ref, bw0_ref, bwr_ref, g_ref, b_ref, p_ref, o_ref,
               pad_in, pad_act):
        # Zero the H-padded scratch buffers once (rows just outside the
        # interior are read as SAME padding; interiors get overwritten).
        pad_in[...] = jnp.zeros(pad_in.shape, pad_in.dtype)
        pad_act[...] = jnp.zeros(pad_act.shape, pad_act.dtype)
        # Layer-0 input (lane-dense (N, H, W*Cin)) into the H-interior
        # (aligned store: PAD_TOP is a multiple of the sublane tile).
        pad_in[:, PAD_TOP:PAD_TOP + H, :] = x_ref[...]

        proj = p_ref[...]   # (WCout, WCout): per-channel sum + lane broadcast
        y = None
        for layer in range(n_layers):
            first = layer == 0
            src = pad_in if first else pad_act
            cw = WCin if first else WCout

            # Convolution: one matmul per kh tap row.  The banded weight
            # matrix already encodes the 3 kw taps and the SAME W-padding.
            acc = None
            for kh in range(K):
                w_kh = bw0_ref[kh] if first else bwr_ref[(layer - 1) * K + kh]
                r0 = PAD_TOP - 1 + kh                       # 7, 8, 9
                slab = src[:, r0:r0 + H, :].reshape(M, cw)  # (N*H, W*C) lane-dense
                part = jnp.dot(slab, w_kh, preferred_element_type=jnp.float32)
                acc = part if acc is None else acc + part   # (N*H, W*Cout)

            # BatchNorm2d (training-mode stats over N,H,W) + ReLU, folded
            # into one FMA.  Conv bias omitted: exactly cancelled by the
            # mean subtraction.  One-pass sum / sum-of-squares statistics.
            rs = jnp.sum(acc, axis=0, keepdims=True)            # (1, WCout)
            rsq = jnp.sum(acc * acc, axis=0, keepdims=True)     # (1, WCout)
            mean = jnp.dot(rs, proj,
                           preferred_element_type=jnp.float32) * inv_count
            msq = jnp.dot(rsq, proj,
                          preferred_element_type=jnp.float32) * inv_count
            var = msq - mean * mean                              # biased var
            scale = g_ref[layer:layer + 1, :] * lax.rsqrt(var + EPS)
            shift = b_ref[layer:layer + 1, :] - mean * scale
            y = jnp.maximum(acc * scale + shift, 0.0)            # (N*H, WCout)

            if layer < n_layers - 1:
                # Next layer's input: aligned store into the H-interior.
                pad_act[:, PAD_TOP:PAD_TOP + H, :] = y.reshape(N, H, WCout)

        o_ref[...] = y   # dense (N*H, W*Cout) = (32, 128) store

    return kernel


# ----------------------------- wrapper -----------------------------
def _banded_weights(w_hwio, W):
    """(K,K,Cin,Cout) -> (K, W*Cin, W*Cout).  Band structure folds the kw taps
    and the SAME W-padding, so conv == sum_kh slab_kh @ band_kh."""
    K = w_hwio.shape[0]
    mats = []
    for kh in range(K):
        m = 0.0
        for kw in range(K):
            band = jnp.eye(W, k=1 - kw, dtype=jnp.float32)  # in_col = out_col + kw - 1
            m = m + jnp.kron(band, w_hwio[kh, kw].astype(jnp.float32))
        mats.append(m)
    return jnp.stack(mats, axis=0)


def quad_conv_pallas(x_nchw, params):
    """QuadConv forward.  x_nchw: (N, Cin, H, W) -> (N, Cout, H, W)."""
    N, Cin, H, W = x_nchw.shape
    K, _, _, Cout = params[0][0].shape
    n_layers = len(params)
    WCin, WCout = W * Cin, W * Cout

    # Layout glue (outside the kernel): NCHW -> lane-dense (N, H, W*Cin).
    x = jnp.transpose(x_nchw, (0, 2, 3, 1)).reshape(N, H, WCin)

    bw0 = _banded_weights(params[0][0], W)                                    # (K, WCin, WCout)
    bwr = jnp.concatenate([_banded_weights(p[0], W) for p in params[1:]], 0)  # ((n-1)K, WCout, WCout)
    # gamma / beta pre-tiled to the lane-dense (W*Cout) layout.
    gammas = jnp.stack([jnp.tile(p[2], W) for p in params], 0)                # (n, WCout)
    betas = jnp.stack([jnp.tile(p[3], W) for p in params], 0)                 # (n, WCout)
    # (row_sums @ proj)[w*Cout + c] = total of channel c, broadcast over w.
    proj = jnp.kron(jnp.ones((W, W), jnp.float32),
                    jnp.eye(Cout, dtype=jnp.float32))                         # (WCout, WCout)

    HB = PAD_TOP + H + 8   # H-padded scratch height (aligned interior + slack)
    kernel = _make_quad_kernel(N, H, W, Cin, Cout, K, n_layers)

    out2d = pl.pallas_call(
        kernel,
        out_shape=jax.ShapeDtypeStruct((N * H, WCout), jnp.float32),
        grid=(1,),
        in_specs=[
            pl.BlockSpec((N, H, WCin), lambda i: (0, 0, 0)),
            pl.BlockSpec((K, WCin, WCout), lambda i: (0, 0, 0)),
            pl.BlockSpec(((n_layers - 1) * K, WCout, WCout), lambda i: (0, 0, 0)),
            pl.BlockSpec((n_layers, WCout), lambda i: (0, 0)),
            pl.BlockSpec((n_layers, WCout), lambda i: (0, 0)),
            pl.BlockSpec((WCout, WCout), lambda i: (0, 0)),
        ],
        out_specs=pl.BlockSpec((N * H, WCout), lambda i: (0, 0)),
        scratch_shapes=[
            pltpu.VMEM((N, HB, WCin), jnp.float32),   # H-padded layer-0 input
            pltpu.VMEM((N, HB, WCout), jnp.float32),  # H-padded inter-layer act
        ],
        compiler_params=pltpu.CompilerParams(dimension_semantics=("arbitrary",)),
    )(x, bw0, bwr, gammas, betas, proj)

    out = out2d.reshape(N, H, W, Cout)
    return jnp.transpose(out, (0, 3, 1, 2))   # NHWC -> NCHW


# ---------------- pure-JAX reference (for verification) ----------------
def single_conv_ref(x_nhwc, w_hwio, bias, gamma, beta):
    y = lax.conv_general_dilated(
        x_nhwc, w_hwio, window_strides=(1, 1), padding="SAME",
        dimension_numbers=("NHWC", "HWIO", "NHWC"))
    y = y + bias[None, None, None, :]
    mean = jnp.mean(y, axis=(0, 1, 2), keepdims=True)
    var = jnp.mean((y - mean) ** 2, axis=(0, 1, 2), keepdims=True)
    y = (y - mean) * lax.rsqrt(var + EPS) * gamma[None, None, None, :] \
        + beta[None, None, None, :]
    return jnp.maximum(y, 0.0)


def quad_conv_ref(x_nchw, params):
    x = jnp.transpose(x_nchw, (0, 2, 3, 1))
    for (w, b, g, be) in params:
        x = single_conv_ref(x, w, b, g, be)
    return jnp.transpose(x, (0, 3, 1, 2))


# ---------------- deterministic parameter init ----------------
def init_params(key, in_channels, out_channels, kernel_size=3, n_layers=4):
    params = []
    cin = in_channels
    for _ in range(n_layers):
        key, kw, kb, kg, kbe = jax.random.split(key, 5)
        w = 0.1 * jax.random.normal(
            kw, (kernel_size, kernel_size, cin, out_channels), jnp.float32)
        b = 0.1 * jax.random.normal(kb, (out_channels,), jnp.float32)
        g = 1.0 + 0.1 * jax.random.normal(kg, (out_channels,), jnp.float32)
        be = 0.1 * jax.random.normal(kbe, (out_channels,), jnp.float32)
        params.append((w, b, g, be))
        cin = out_channels
    return params


if __name__ == "__main__":
    key = jax.random.PRNGKey(0)
    key, kx, kp = jax.random.split(key, 3)

    N, Cin, H, W = 2, 4, 16, 16
    Cout = 8
    x = jax.random.normal(kx, (N, Cin, H, W), jnp.float32)  # NCHW, like PyTorch
    params = init_params(kp, Cin, Cout, kernel_size=3, n_layers=4)

    out = jax.block_until_ready(quad_conv_pallas(x, params))
    ref = jax.block_until_ready(quad_conv_ref(x, params))

    assert out.shape == (N, Cout, H, W), out.shape
    np.testing.assert_allclose(np.asarray(out), np.asarray(ref),
                               rtol=2e-4, atol=2e-4)
    print("KERNEL_OK")
</pallas_src>

<mosaic_0001>
module attributes {stable_mosaic.version = 11 : i64} {
  func.func @kernel(%arg0: i32, %arg1: memref<2x16x64xf32, #tpu.memory_space<vmem>>, %arg2: memref<3x64x128xf32, #tpu.memory_space<vmem>>, %arg3: memref<9x128x128xf32, #tpu.memory_space<vmem>>, %arg4: memref<4x128xf32, #tpu.memory_space<vmem>>, %arg5: memref<4x128xf32, #tpu.memory_space<vmem>>, %arg6: memref<128x128xf32, #tpu.memory_space<vmem>>, %arg7: memref<32x128xf32, #tpu.memory_space<vmem>>, %arg8: memref<2x32x64xf32, #tpu.memory_space<vmem>>, %arg9: memref<2x32x128xf32, #tpu.memory_space<vmem>>) attributes {dimension_semantics = [#tpu.dimension_semantics<arbitrary>], iteration_bounds = array<i64: 1>, scalar_prefetch = 0 : i64, scratch_operands = 2 : i64, tpu.core_type = #tpu.core_type<tc>, window_params = [{pipeline_mode = #tpu.pipeline_mode<synchronous>, transform_indices = @transform_0, window_bounds = array<i64: 2, 16, 64>}, {pipeline_mode = #tpu.pipeline_mode<synchronous>, transform_indices = @transform_1, window_bounds = array<i64: 3, 64, 128>}, {pipeline_mode = #tpu.pipeline_mode<synchronous>, transform_indices = @transform_2, window_bounds = array<i64: 9, 128, 128>}, {pipeline_mode = #tpu.pipeline_mode<synchronous>, transform_indices = @transform_3, window_bounds = array<i64: 4, 128>}, {pipeline_mode = #tpu.pipeline_mode<synchronous>, transform_indices = @transform_4, window_bounds = array<i64: 4, 128>}, {pipeline_mode = #tpu.pipeline_mode<synchronous>, transform_indices = @transform_5, window_bounds = array<i64: 128, 128>}, {pipeline_mode = #tpu.pipeline_mode<synchronous>, transform_indices = @transform_6, window_bounds = array<i64: 32, 128>}]} {
    %cst = arith.constant 0.000000e+00 : f32
    %0 = vector.broadcast %cst : f32 to vector<2x32x64xf32>
    %c0 = arith.constant 0 : index
    %c0_0 = arith.constant 0 : index
    %c0_1 = arith.constant 0 : index
    %1 = vector.load %arg8[%c0, %c0_0, %c0_1] : memref<2x32x64xf32, #tpu.memory_space<vmem>>, vector<2x32x64xf32>
    tpu.vector_store %arg8[%c0, %c0_0, %c0_1], %0 {strides = array<i32>} : memref<2x32x64xf32, #tpu.memory_space<vmem>>, vector<2x32x64xf32>,
    %cst_2 = arith.constant 0.000000e+00 : f32
    %2 = vector.broadcast %cst_2 : f32 to vector<2x32x128xf32>
    %c0_3 = arith.constant 0 : index
    %c0_4 = arith.constant 0 : index
    %c0_5 = arith.constant 0 : index
    %3 = vector.load %arg9[%c0_3, %c0_4, %c0_5] : memref<2x32x128xf32, #tpu.memory_space<vmem>>, vector<2x32x128xf32>
    tpu.vector_store %arg9[%c0_3, %c0_4, %c0_5], %2 {strides = array<i32>} : memref<2x32x128xf32, #tpu.memory_space<vmem>>, vector<2x32x128xf32>,
    %c0_6 = arith.constant 0 : index
    %c0_7 = arith.constant 0 : index
    %c0_8 = arith.constant 0 : index
    %4 = vector.load %arg1[%c0_6, %c0_7, %c0_8] : memref<2x16x64xf32, #tpu.memory_space<vmem>>, vector<2x16x64xf32>
    %c0_9 = arith.constant 0 : index
    %c8 = arith.constant 8 : index
    %c0_10 = arith.constant 0 : index
    %5 = vector.load %arg8[%c0_9, %c8, %c0_10] : memref<2x32x64xf32, #tpu.memory_space<vmem>>, vector<2x16x64xf32>
    tpu.vector_store %arg8[%c0_9, %c8, %c0_10], %4 {strides = array<i32>} : memref<2x32x64xf32, #tpu.memory_space<vmem>>, vector<2x16x64xf32>,
    %c0_11 = arith.constant 0 : index
    %c0_12 = arith.constant 0 : index
    %6 = vector.load %arg6[%c0_11, %c0_12] : memref<128x128xf32, #tpu.memory_space<vmem>>, vector<128x128xf32>
    %c0_13 = arith.constant 0 : index
    %c0_14 = arith.constant 0 : index
    %c0_15 = arith.constant 0 : index
    %7 = vector.load %arg2[%c0_13, %c0_14, %c0_15] : memref<3x64x128xf32, #tpu.memory_space<vmem>>, vector<1x64x128xf32>
    %8 = vector.shape_cast %7 : vector<1x64x128xf32> to vector<64x128xf32>
    %c0_16 = arith.constant 0 : index
    %c7 = arith.constant 7 : index
    %c0_17 = arith.constant 0 : index
    %9 = vector.load %arg8[%c0_16, %c7, %c0_17] : memref<2x32x64xf32, #tpu.memory_space<vmem>>, vector<2x16x64xf32>
    %10 = vector.shape_cast %9 : vector<2x16x64xf32> to vector<32x64xf32>
    %cst_18 = arith.constant dense<0.000000e+00> : vector<32x128xf32>
    %11 = tpu.matmul %10, %8, %cst_18 {dimension_numbers = #tpu.dot_dimension_numbers<[1], [0], [0], [1], [0, 0, 1, 1], [], []>} : vector<32x64xf32>, vector<64x128xf32>, vector<32x128xf32> -> vector<32x128xf32>
    %c1 = arith.constant 1 : index
    %c0_19 = arith.constant 0 : index
    %c0_20 = arith.constant 0 : index
    %12 = vector.load %arg2[%c1, %c0_19, %c0_20] : memref<3x64x128xf32, #tpu.memory_space<vmem>>, vector<1x64x128xf32>
    %13 = vector.shape_cast %12 : vector<1x64x128xf32> to vector<64x128xf32>
    %c0_21 = arith.constant 0 : index
    %c8_22 = arith.constant 8 : index
    %c0_23 = arith.constant 0 : index
    %14 = vector.load %arg8[%c0_21, %c8_22, %c0_23] : memref<2x32x64xf32, #tpu.memory_space<vmem>>, vector<2x16x64xf32>
    %15 = vector.shape_cast %14 : vector<2x16x64xf32> to vector<32x64xf32>
    %cst_24 = arith.constant dense<0.000000e+00> : vector<32x128xf32>
    %16 = tpu.matmul %15, %13, %cst_24 {dimension_numbers = #tpu.dot_dimension_numbers<[1], [0], [0], [1], [0, 0, 1, 1], [], []>} : vector<32x64xf32>, vector<64x128xf32>, vector<32x128xf32> -> vector<32x128xf32>
    %17 = arith.addf %11, %16 : vector<32x128xf32>
    %c2 = arith.constant 2 : index
    %c0_25 = arith.constant 0 : index
    %c0_26 = arith.constant 0 : index
    %18 = vector.load %arg2[%c2, %c0_25, %c0_26] : memref<3x64x128xf32, #tpu.memory_space<vmem>>, vector<1x64x128xf32>
    %19 = vector.shape_cast %18 : vector<1x64x128xf32> to vector<64x128xf32>
    %c0_27 = arith.constant 0 : index
    %c9 = arith.constant 9 : index
    %c0_28 = arith.constant 0 : index
    %20 = vector.load %arg8[%c0_27, %c9, %c0_28] : memref<2x32x64xf32, #tpu.memory_space<vmem>>, vector<2x16x64xf32>
    %21 = vector.shape_cast %20 : vector<2x16x64xf32> to vector<32x64xf32>
    %cst_29 = arith.constant dense<0.000000e+00> : vector<32x128xf32>
    %22 = tpu.matmul %21, %19, %cst_29 {dimension_numbers = #tpu.dot_dimension_numbers<[1], [0], [0], [1], [0, 0, 1, 1], [], []>} : vector<32x64xf32>, vector<64x128xf32>, vector<32x128xf32> -> vector<32x128xf32>
    %23 = arith.addf %17, %22 : vector<32x128xf32>
    %cst_30 = arith.constant dense<0.000000e+00> : vector<128xf32>
    %24 = vector.multi_reduction <add>, %23, %cst_30 [0] : vector<32x128xf32> to vector<128xf32>
    %25 = vector.shape_cast %24 : vector<128xf32> to vector<1x128xf32>
    %26 = arith.mulf %23, %23 : vector<32x128xf32>
    %cst_31 = arith.constant dense<0.000000e+00> : vector<128xf32>
    %27 = vector.multi_reduction <add>, %26, %cst_31 [0] : vector<32x128xf32> to vector<128xf32>
    %28 = vector.shape_cast %27 : vector<128xf32> to vector<1x128xf32>
    %cst_32 = arith.constant dense<0.000000e+00> : vector<1x128xf32>
    %29 = tpu.matmul %25, %6, %cst_32 {dimension_numbers = #tpu.dot_dimension_numbers<[1], [0], [0], [1], [0, 0, 1, 1], [], []>} : vector<1x128xf32>, vector<128x128xf32>, vector<1x128xf32> -> vector<1x128xf32>
    %cst_33 = arith.constant 0.001953125 : f32
    %30 = vector.broadcast %cst_33 : f32 to vector<1x128xf32>
    %31 = arith.mulf %29, %30 : vector<1x128xf32>
    %cst_34 = arith.constant dense<0.000000e+00> : vector<1x128xf32>
    %32 = tpu.matmul %28, %6, %cst_34 {dimension_numbers = #tpu.dot_dimension_numbers<[1], [0], [0], [1], [0, 0, 1, 1], [], []>} : vector<1x128xf32>, vector<128x128xf32>, vector<1x128xf32> -> vector<1x128xf32>
    %cst_35 = arith.constant 0.001953125 : f32
    %33 = vector.broadcast %cst_35 : f32 to vector<1x128xf32>
    %34 = arith.mulf %32, %33 : vector<1x128xf32>
    %35 = arith.mulf %31, %31 : vector<1x128xf32>
    %36 = arith.subf %34, %35 : vector<1x128xf32>
    %c0_36 = arith.constant 0 : index
    %c0_37 = arith.constant 0 : index
    %37 = vector.load %arg4[%c0_36, %c0_37] : memref<4x128xf32, #tpu.memory_space<vmem>>, vector<1x128xf32>
    %cst_38 = arith.constant 9.99999974E-6 : f32
    %38 = vector.broadcast %cst_38 : f32 to vector<1x128xf32>
    %39 = arith.addf %36, %38 : vector<1x128xf32>
    %40 = math.rsqrt %39 : vector<1x128xf32>
    %41 = arith.mulf %37, %40 : vector<1x128xf32>
    %c0_39 = arith.constant 0 : index
    %c0_40 = arith.constant 0 : index
    %42 = vector.load %arg5[%c0_39, %c0_40] : memref<4x128xf32, #tpu.memory_space<vmem>>, vector<1x128xf32>
    %43 = arith.mulf %31, %41 : vector<1x128xf32>
    %44 = arith.subf %42, %43 : vector<1x128xf32>
    %45 = vector.broadcast %41 : vector<1x128xf32> to vector<32x128xf32>
    %46 = arith.mulf %23, %45 : vector<32x128xf32>
    %47 = vector.broadcast %44 : vector<1x128xf32> to vector<32x128xf32>
    %48 = arith.addf %46, %47 : vector<32x128xf32>
    %cst_41 = arith.constant 0.000000e+00 : f32
    %49 = vector.broadcast %cst_41 : f32 to vector<32x128xf32>
    %50 = arith.maximumf %48, %49 : vector<32x128xf32>
    %51 = vector.shape_cast %50 : vector<32x128xf32> to vector<2x16x128xf32>
    %c0_42 = arith.constant 0 : index
    %c8_43 = arith.constant 8 : index
    %c0_44 = arith.constant 0 : index
    %52 = vector.load %arg9[%c0_42, %c8_43, %c0_44] : memref<2x32x128xf32, #tpu.memory_space<vmem>>, vector<2x16x128xf32>
    tpu.vector_store %arg9[%c0_42, %c8_43, %c0_44], %51 {strides = array<i32>} : memref<2x32x128xf32, #tpu.memory_space<vmem>>, vector<2x16x128xf32>,
    %c0_45 = arith.constant 0 : index
    %c0_46 = arith.constant 0 : index
    %c0_47 = arith.constant 0 : index
    %53 = vector.load %arg3[%c0_45, %c0_46, %c0_47] : memref<9x128x128xf32, #tpu.memory_space<vmem>>, vector<1x128x128xf32>
    %54 = vector.shape_cast %53 : vector<1x128x128xf32> to vector<128x128xf32>
    %c0_48 = arith.constant 0 : index
    %c7_49 = arith.constant 7 : index
    %c0_50 = arith.constant 0 : index
    %55 = vector.load %arg9[%c0_48, %c7_49, %c0_50] : memref<2x32x128xf32, #tpu.memory_space<vmem>>, vector<2x16x128xf32>
    %56 = vector.shape_cast %55 : vector<2x16x128xf32> to vector<32x128xf32>
    %cst_51 = arith.constant dense<0.000000e+00> : vector<32x128xf32>
    %57 = tpu.matmul %56, %54, %cst_51 {dimension_numbers = #tpu.dot_dimension_numbers<[1], [0], [0], [1], [0, 0, 1, 1], [], []>} : vector<32x128xf32>, vector<128x128xf32>, vector<32x128xf32> -> vector<32x128xf32>
    %c1_52 = arith.constant 1 : index
    %c0_53 = arith.constant 0 : index
    %c0_54 = arith.constant 0 : index
    %58 = vector.load %arg3[%c1_52, %c0_53, %c0_54] : memref<9x128x128xf32, #tpu.memory_space<vmem>>, vector<1x128x128xf32>
    %59 = vector.shape_cast %58 : vector<1x128x128xf32> to vector<128x128xf32>
    %c0_55 = arith.constant 0 : index
    %c8_56 = arith.constant 8 : index
    %c0_57 = arith.constant 0 : index
    %60 = vector.load %arg9[%c0_55, %c8_56, %c0_57] : memref<2x32x128xf32, #tpu.memory_space<vmem>>, vector<2x16x128xf32>
    %61 = vector.shape_cast %60 : vector<2x16x128xf32> to vector<32x128xf32>
    %cst_58 = arith.constant dense<0.000000e+00> : vector<32x128xf32>
    %62 = tpu.matmul %61, %59, %cst_58 {dimension_numbers = #tpu.dot_dimension_numbers<[1], [0], [0], [1], [0, 0, 1, 1], [], []>} : vector<32x128xf32>, vector<128x128xf32>, vector<32x128xf32> -> vector<32x128xf32>
    %63 = arith.addf %57, %62 : vector<32x128xf32>
    %c2_59 = arith.constant 2 : index
    %c0_60 = arith.constant 0 : index
    %c0_61 = arith.constant 0 : index
    %64 = vector.load %arg3[%c2_59, %c0_60, %c0_61] : memref<9x128x128xf32, #tpu.memory_space<vmem>>, vector<1x128x128xf32>
    %65 = vector.shape_cast %64 : vector<1x128x128xf32> to vector<128x128xf32>
    %c0_62 = arith.constant 0 : index
    %c9_63 = arith.constant 9 : index
    %c0_64 = arith.constant 0 : index
    %66 = vector.load %arg9[%c0_62, %c9_63, %c0_64] : memref<2x32x128xf32, #tpu.memory_space<vmem>>, vector<2x16x128xf32>
    %67 = vector.shape_cast %66 : vector<2x16x128xf32> to vector<32x128xf32>
    %cst_65 = arith.constant dense<0.000000e+00> : vector<32x128xf32>
    %68 = tpu.matmul %67, %65, %cst_65 {dimension_numbers = #tpu.dot_dimension_numbers<[1], [0], [0], [1], [0, 0, 1, 1], [], []>} : vector<32x128xf32>, vector<128x128xf32>, vector<32x128xf32> -> vector<32x128xf32>
    %69 = arith.addf %63, %68 : vector<32x128xf32>
    %cst_66 = arith.constant dense<0.000000e+00> : vector<128xf32>
    %70 = vector.multi_reduction <add>, %69, %cst_66 [0] : vector<32x128xf32> to vector<128xf32>
    %71 = vector.shape_cast %70 : vector<128xf32> to vector<1x128xf32>
    %72 = arith.mulf %69, %69 : vector<32x128xf32>
    %cst_67 = arith.constant dense<0.000000e+00> : vector<128xf32>
    %73 = vector.multi_reduction <add>, %72, %cst_67 [0] : vector<32x128xf32> to vector<128xf32>
    %74 = vector.shape_cast %73 : vector<128xf32> to vector<1x128xf32>
    %cst_68 = arith.constant dense<0.000000e+00> : vector<1x128xf32>
    %75 = tpu.matmul %71, %6, %cst_68 {dimension_numbers = #tpu.dot_dimension_numbers<[1], [0], [0], [1], [0, 0, 1, 1], [], []>} : vector<1x128xf32>, vector<128x128xf32>, vector<1x128xf32> -> vector<1x128xf32>
    %cst_69 = arith.constant 0.001953125 : f32
    %76 = vector.broadcast %cst_69 : f32 to vector<1x128xf32>
    %77 = arith.mulf %75, %76 : vector<1x128xf32>
    %cst_70 = arith.constant dense<0.000000e+00> : vector<1x128xf32>
    %78 = tpu.matmul %74, %6, %cst_70 {dimension_numbers = #tpu.dot_dimension_numbers<[1], [0], [0], [1], [0, 0, 1, 1], [], []>} : vector<1x128xf32>, vector<128x128xf32>, vector<1x128xf32> -> vector<1x128xf32>
    %cst_71 = arith.constant 0.001953125 : f32
    %79 = vector.broadcast %cst_71 : f32 to vector<1x128xf32>
    %80 = arith.mulf %78, %79 : vector<1x128xf32>
    %81 = arith.mulf %77, %77 : vector<1x128xf32>
    %82 = arith.subf %80, %81 : vector<1x128xf32>
    %c1_72 = arith.constant 1 : index
    %c0_73 = arith.constant 0 : index
    %83 = vector.load %arg4[%c1_72, %c0_73] : memref<4x128xf32, #tpu.memory_space<vmem>>, vector<1x128xf32>
    %cst_74 = arith.constant 9.99999974E-6 : f32
    %84 = vector.broadcast %cst_74 : f32 to vector<1x128xf32>
    %85 = arith.addf %82, %84 : vector<1x128xf32>
    %86 = math.rsqrt %85 : vector<1x128xf32>
    %87 = arith.mulf %83, %86 : vector<1x128xf32>
    %c1_75 = arith.constant 1 : index
    %c0_76 = arith.constant 0 : index
    %88 = vector.load %arg5[%c1_75, %c0_76] : memref<4x128xf32, #tpu.memory_space<vmem>>, vector<1x128xf32>
    %89 = arith.mulf %77, %87 : vector<1x128xf32>
    %90 = arith.subf %88, %89 : vector<1x128xf32>
    %91 = vector.broadcast %87 : vector<1x128xf32> to vector<32x128xf32>
    %92 = arith.mulf %69, %91 : vector<32x128xf32>
    %93 = vector.broadcast %90 : vector<1x128xf32> to vector<32x128xf32>
    %94 = arith.addf %92, %93 : vector<32x128xf32>
    %cst_77 = arith.constant 0.000000e+00 : f32
    %95 = vector.broadcast %cst_77 : f32 to vector<32x128xf32>
    %96 = arith.maximumf %94, %95 : vector<32x128xf32>
    %97 = vector.shape_cast %96 : vector<32x128xf32> to vector<2x16x128xf32>
    %c0_78 = arith.constant 0 : index
    %c8_79 = arith.constant 8 : index
    %c0_80 = arith.constant 0 : index
    %98 = vector.load %arg9[%c0_78, %c8_79, %c0_80] : memref<2x32x128xf32, #tpu.memory_space<vmem>>, vector<2x16x128xf32>
    tpu.vector_store %arg9[%c0_78, %c8_79, %c0_80], %97 {strides = array<i32>} : memref<2x32x128xf32, #tpu.memory_space<vmem>>, vector<2x16x128xf32>,
    %c3 = arith.constant 3 : index
    %c0_81 = arith.constant 0 : index
    %c0_82 = arith.constant 0 : index
    %99 = vector.load %arg3[%c3, %c0_81, %c0_82] : memref<9x128x128xf32, #tpu.memory_space<vmem>>, vector<1x128x128xf32>
    %100 = vector.shape_cast %99 : vector<1x128x128xf32> to vector<128x128xf32>
    %c0_83 = arith.constant 0 : index
    %c7_84 = arith.constant 7 : index
    %c0_85 = arith.constant 0 : index
    %101 = vector.load %arg9[%c0_83, %c7_84, %c0_85] : memref<2x32x128xf32, #tpu.memory_space<vmem>>, vector<2x16x128xf32>
    %102 = vector.shape_cast %101 : vector<2x16x128xf32> to vector<32x128xf32>
    %cst_86 = arith.constant dense<0.000000e+00> : vector<32x128xf32>
    %103 = tpu.matmul %102, %100, %cst_86 {dimension_numbers = #tpu.dot_dimension_numbers<[1], [0], [0], [1], [0, 0, 1, 1], [], []>} : vector<32x128xf32>, vector<128x128xf32>, vector<32x128xf32> -> vector<32x128xf32>
    %c4 = arith.constant 4 : index
    %c0_87 = arith.constant 0 : index
    %c0_88 = arith.constant 0 : index
    %104 = vector.load %arg3[%c4, %c0_87, %c0_88] : memref<9x128x128xf32, #tpu.memory_space<vmem>>, vector<1x128x128xf32>
    %105 = vector.shape_cast %104 : vector<1x128x128xf32> to vector<128x128xf32>
    %c0_89 = arith.constant 0 : index
    %c8_90 = arith.constant 8 : index
    %c0_91 = arith.constant 0 : index
    %106 = vector.load %arg9[%c0_89, %c8_90, %c0_91] : memref<2x32x128xf32, #tpu.memory_space<vmem>>, vector<2x16x128xf32>
    %107 = vector.shape_cast %106 : vector<2x16x128xf32> to vector<32x128xf32>
    %cst_92 = arith.constant dense<0.000000e+00> : vector<32x128xf32>
    %108 = tpu.matmul %107, %105, %cst_92 {dimension_numbers = #tpu.dot_dimension_numbers<[1], [0], [0], [1], [0, 0, 1, 1], [], []>} : vector<32x128xf32>, vector<128x128xf32>, vector<32x128xf32> -> vector<32x128xf32>
    %109 = arith.addf %103, %108 : vector<32x128xf32>
    %c5 = arith.constant 5 : index
    %c0_93 = arith.constant 0 : index
    %c0_94 = arith.constant 0 : index
    %110 = vector.load %arg3[%c5, %c0_93, %c0_94] : memref<9x128x128xf32, #tpu.memory_space<vmem>>, vector<1x128x128xf32>
    %111 = vector.shape_cast %110 : vector<1x128x128xf32> to vector<128x128xf32>
    %c0_95 = arith.constant 0 : index
    %c9_96 = arith.constant 9 : index
    %c0_97 = arith.constant 0 : index
    %112 = vector.load %arg9[%c0_95, %c9_96, %c0_97] : memref<2x32x128xf32, #tpu.memory_space<vmem>>, vector<2x16x128xf32>
    %113 = vector.shape_cast %112 : vector<2x16x128xf32> to vector<32x128xf32>
    %cst_98 = arith.constant dense<0.000000e+00> : vector<32x128xf32>
    %114 = tpu.matmul %113, %111, %cst_98 {dimension_numbers = #tpu.dot_dimension_numbers<[1], [0], [0], [1], [0, 0, 1, 1], [], []>} : vector<32x128xf32>, vector<128x128xf32>, vector<32x128xf32> -> vector<32x128xf32>
    %115 = arith.addf %109, %114 : vector<32x128xf32>
    %cst_99 = arith.constant dense<0.000000e+00> : vector<128xf32>
    %116 = vector.multi_reduction <add>, %115, %cst_99 [0] : vector<32x128xf32> to vector<128xf32>
    %117 = vector.shape_cast %116 : vector<128xf32> to vector<1x128xf32>
    %118 = arith.mulf %115, %115 : vector<32x128xf32>
    %cst_100 = arith.constant dense<0.000000e+00> : vector<128xf32>
    %119 = vector.multi_reduction <add>, %118, %cst_100 [0] : vector<32x128xf32> to vector<128xf32>
    %120 = vector.shape_cast %119 : vector<128xf32> to vector<1x128xf32>
    %cst_101 = arith.constant dense<0.000000e+00> : vector<1x128xf32>
    %121 = tpu.matmul %117, %6, %cst_101 {dimension_numbers = #tpu.dot_dimension_numbers<[1], [0], [0], [1], [0, 0, 1, 1], [], []>} : vector<1x128xf32>, vector<128x128xf32>, vector<1x128xf32> -> vector<1x128xf32>
    %cst_102 = arith.constant 0.001953125 : f32
    %122 = vector.broadcast %cst_102 : f32 to vector<1x128xf32>
    %123 = arith.mulf %121, %122 : vector<1x128xf32>
    %cst_103 = arith.constant dense<0.000000e+00> : vector<1x128xf32>
    %124 = tpu.matmul %120, %6, %cst_103 {dimension_numbers = #tpu.dot_dimension_numbers<[1], [0], [0], [1], [0, 0, 1, 1], [], []>} : vector<1x128xf32>, vector<128x128xf32>, vector<1x128xf32> -> vector<1x128xf32>
    %cst_104 = arith.constant 0.001953125 : f32
    %125 = vector.broadcast %cst_104 : f32 to vector<1x128xf32>
    %126 = arith.mulf %124, %125 : vector<1x128xf32>
    %127 = arith.mulf %123, %123 : vector<1x128xf32>
    %128 = arith.subf %126, %127 : vector<1x128xf32>
    %c2_105 = arith.constant 2 : index
    %c0_106 = arith.constant 0 : index
    %129 = vector.load %arg4[%c2_105, %c0_106] : memref<4x128xf32, #tpu.memory_space<vmem>>, vector<1x128xf32>
    %cst_107 = arith.constant 9.99999974E-6 : f32
    %130 = vector.broadcast %cst_107 : f32 to vector<1x128xf32>
    %131 = arith.addf %128, %130 : vector<1x128xf32>
    %132 = math.rsqrt %131 : vector<1x128xf32>
    %133 = arith.mulf %129, %132 : vector<1x128xf32>
    %c2_108 = arith.constant 2 : index
    %c0_109 = arith.constant 0 : index
    %134 = vector.load %arg5[%c2_108, %c0_109] : memref<4x128xf32, #tpu.memory_space<vmem>>, vector<1x128xf32>
    %135 = arith.mulf %123, %133 : vector<1x128xf32>
    %136 = arith.subf %134, %135 : vector<1x128xf32>
    %137 = vector.broadcast %133 : vector<1x128xf32> to vector<32x128xf32>
    %138 = arith.mulf %115, %137 : vector<32x128xf32>
    %139 = vector.broadcast %136 : vector<1x128xf32> to vector<32x128xf32>
    %140 = arith.addf %138, %139 : vector<32x128xf32>
    %cst_110 = arith.constant 0.000000e+00 : f32
    %141 = vector.broadcast %cst_110 : f32 to vector<32x128xf32>
    %142 = arith.maximumf %140, %141 : vector<32x128xf32>
    %143 = vector.shape_cast %142 : vector<32x128xf32> to vector<2x16x128xf32>
    %c0_111 = arith.constant 0 : index
    %c8_112 = arith.constant 8 : index
    %c0_113 = arith.constant 0 : index
    %144 = vector.load %arg9[%c0_111, %c8_112, %c0_113] : memref<2x32x128xf32, #tpu.memory_space<vmem>>, vector<2x16x128xf32>
    tpu.vector_store %arg9[%c0_111, %c8_112, %c0_113], %143 {strides = array<i32>} : memref<2x32x128xf32, #tpu.memory_space<vmem>>, vector<2x16x128xf32>,
    %c6 = arith.constant 6 : index
    %c0_114 = arith.constant 0 : index
    %c0_115 = arith.constant 0 : index
    %145 = vector.load %arg3[%c6, %c0_114, %c0_115] : memref<9x128x128xf32, #tpu.memory_space<vmem>>, vector<1x128x128xf32>
    %146 = vector.shape_cast %145 : vector<1x128x128xf32> to vector<128x128xf32>
    %c0_116 = arith.constant 0 : index
    %c7_117 = arith.constant 7 : index
    %c0_118 = arith.constant 0 : index
    %147 = vector.load %arg9[%c0_116, %c7_117, %c0_118] : memref<2x32x128xf32, #tpu.memory_space<vmem>>, vector<2x16x128xf32>
    %148 = vector.shape_cast %147 : vector<2x16x128xf32> to vector<32x128xf32>
    %cst_119 = arith.constant dense<0.000000e+00> : vector<32x128xf32>
    %149 = tpu.matmul %148, %146, %cst_119 {dimension_numbers = #tpu.dot_dimension_numbers<[1], [0], [0], [1], [0, 0, 1, 1], [], []>} : vector<32x128xf32>, vector<128x128xf32>, vector<32x128xf32> -> vector<32x128xf32>
    %c7_120 = arith.constant 7 : index
    %c0_121 = arith.constant 0 : index
    %c0_122 = arith.constant 0 : index
    %150 = vector.load %arg3[%c7_120, %c0_121, %c0_122] : memref<9x128x128xf32, #tpu.memory_space<vmem>>, vector<1x128x128xf32>
    %151 = vector.shape_cast %150 : vector<1x128x128xf32> to vector<128x128xf32>
    %c0_123 = arith.constant 0 : index
    %c8_124 = arith.constant 8 : index
    %c0_125 = arith.constant 0 : index
    %152 = vector.load %arg9[%c0_123, %c8_124, %c0_125] : memref<2x32x128xf32, #tpu.memory_space<vmem>>, vector<2x16x128xf32>
    %153 = vector.shape_cast %152 : vector<2x16x128xf32> to vector<32x128xf32>
    %cst_126 = arith.constant dense<0.000000e+00> : vector<32x128xf32>
    %154 = tpu.matmul %153, %151, %cst_126 {dimension_numbers = #tpu.dot_dimension_numbers<[1], [0], [0], [1], [0, 0, 1, 1], [], []>} : vector<32x128xf32>, vector<128x128xf32>, vector<32x128xf32> -> vector<32x128xf32>
    %155 = arith.addf %149, %154 : vector<32x128xf32>
    %c8_127 = arith.constant 8 : index
    %c0_128 = arith.constant 0 : index
    %c0_129 = arith.constant 0 : index
    %156 = vector.load %arg3[%c8_127, %c0_128, %c0_129] : memref<9x128x128xf32, #tpu.memory_space<vmem>>, vector<1x128x128xf32>
    %157 = vector.shape_cast %156 : vector<1x128x128xf32> to vector<128x128xf32>
    %c0_130 = arith.constant 0 : index
    %c9_131 = arith.constant 9 : index
    %c0_132 = arith.constant 0 : index
    %158 = vector.load %arg9[%c0_130, %c9_131, %c0_132] : memref<2x32x128xf32, #tpu.memory_space<vmem>>, vector<2x16x128xf32>
    %159 = vector.shape_cast %158 : vector<2x16x128xf32> to vector<32x128xf32>
    %cst_133 = arith.constant dense<0.000000e+00> : vector<32x128xf32>
    %160 = tpu.matmul %159, %157, %cst_133 {dimension_numbers = #tpu.dot_dimension_numbers<[1], [0], [0], [1], [0, 0, 1, 1], [], []>} : vector<32x128xf32>, vector<128x128xf32>, vector<32x128xf32> -> vector<32x128xf32>
    %161 = arith.addf %155, %160 : vector<32x128xf32>
    %cst_134 = arith.constant dense<0.000000e+00> : vector<128xf32>
    %162 = vector.multi_reduction <add>, %161, %cst_134 [0] : vector<32x128xf32> to vector<128xf32>
    %163 = vector.shape_cast %162 : vector<128xf32> to vector<1x128xf32>
    %164 = arith.mulf %161, %161 : vector<32x128xf32>
    %cst_135 = arith.constant dense<0.000000e+00> : vector<128xf32>
    %165 = vector.multi_reduction <add>, %164, %cst_135 [0] : vector<32x128xf32> to vector<128xf32>
    %166 = vector.shape_cast %165 : vector<128xf32> to vector<1x128xf32>
    %cst_136 = arith.constant dense<0.000000e+00> : vector<1x128xf32>
    %167 = tpu.matmul %163, %6, %cst_136 {dimension_numbers = #tpu.dot_dimension_numbers<[1], [0], [0], [1], [0, 0, 1, 1], [], []>} : vector<1x128xf32>, vector<128x128xf32>, vector<1x128xf32> -> vector<1x128xf32>
    %cst_137 = arith.constant 0.001953125 : f32
    %168 = vector.broadcast %cst_137 : f32 to vector<1x128xf32>
    %169 = arith.mulf %167, %168 : vector<1x128xf32>
    %cst_138 = arith.constant dense<0.000000e+00> : vector<1x128xf32>
    %170 = tpu.matmul %166, %6, %cst_138 {dimension_numbers = #tpu.dot_dimension_numbers<[1], [0], [0], [1], [0, 0, 1, 1], [], []>} : vector<1x128xf32>, vector<128x128xf32>, vector<1x128xf32> -> vector<1x128xf32>
    %cst_139 = arith.constant 0.001953125 : f32
    %171 = vector.broadcast %cst_139 : f32 to vector<1x128xf32>
    %172 = arith.mulf %170, %171 : vector<1x128xf32>
    %173 = arith.mulf %169, %169 : vector<1x128xf32>
    %174 = arith.subf %172, %173 : vector<1x128xf32>
    %c3_140 = arith.constant 3 : index
    %c0_141 = arith.constant 0 : index
    %175 = vector.load %arg4[%c3_140, %c0_141] : memref<4x128xf32, #tpu.memory_space<vmem>>, vector<1x128xf32>
    %cst_142 = arith.constant 9.99999974E-6 : f32
    %176 = vector.broadcast %cst_142 : f32 to vector<1x128xf32>
    %177 = arith.addf %174, %176 : vector<1x128xf32>
    %178 = math.rsqrt %177 : vector<1x128xf32>
    %179 = arith.mulf %175, %178 : vector<1x128xf32>
    %c3_143 = arith.constant 3 : index
    %c0_144 = arith.constant 0 : index
    %180 = vector.load %arg5[%c3_143, %c0_144] : memref<4x128xf32, #tpu.memory_space<vmem>>, vector<1x128xf32>
    %181 = arith.mulf %169, %179 : vector<1x128xf32>
    %182 = arith.subf %180, %181 : vector<1x128xf32>
    %183 = vector.broadcast %179 : vector<1x128xf32> to vector<32x128xf32>
    %184 = arith.mulf %161, %183 : vector<32x128xf32>
    %185 = vector.broadcast %182 : vector<1x128xf32> to vector<32x128xf32>
    %186 = arith.addf %184, %185 : vector<32x128xf32>
    %cst_145 = arith.constant 0.000000e+00 : f32
    %187 = vector.broadcast %cst_145 : f32 to vector<32x128xf32>
    %188 = arith.maximumf %186, %187 : vector<32x128xf32>
    %c0_146 = arith.constant 0 : index
    %c0_147 = arith.constant 0 : index
    %189 = vector.load %arg7[%c0_146, %c0_147] : memref<32x128xf32, #tpu.memory_space<vmem>>, vector<32x128xf32>
    tpu.vector_store %arg7[%c0_146, %c0_147], %188 {strides = array<i32>} : memref<32x128xf32, #tpu.memory_space<vmem>>, vector<32x128xf32>,
    return
  }
  func.func @transform_0(%arg0: i32) -> (i32, i32, i32) {
    %c0_i32 = arith.constant 0 : i32
    %c0_i32_0 = arith.constant 0 : i32
    %c0_i32_1 = arith.constant 0 : i32
    %c0_i32_2 = arith.constant 0 : i32
    return %c0_i32, %c0_i32_0, %c0_i32_1 : i32, i32, i32
  }
  func.func @transform_1(%arg0: i32) -> (i32, i32, i32) {
    %c0_i32 = arith.constant 0 : i32
    %c0_i32_0 = arith.constant 0 : i32
    %c0_i32_1 = arith.constant 0 : i32
    %c0_i32_2 = arith.constant 0 : i32
    return %c0_i32, %c0_i32_0, %c0_i32_1 : i32, i32, i32
  }
  func.func @transform_2(%arg0: i32) -> (i32, i32, i32) {
    %c0_i32 = arith.constant 0 : i32
    %c0_i32_0 = arith.constant 0 : i32
    %c0_i32_1 = arith.constant 0 : i32
    %c0_i32_2 = arith.constant 0 : i32
    return %c0_i32, %c0_i32_0, %c0_i32_1 : i32, i32, i32
  }
  func.func @transform_3(%arg0: i32) -> (i32, i32) {
    %c0_i32 = arith.constant 0 : i32
    %c0_i32_0 = arith.constant 0 : i32
    %c0_i32_1 = arith.constant 0 : i32
    return %c0_i32, %c0_i32_0 : i32, i32
  }
  func.func @transform_4(%arg0: i32) -> (i32, i32) {
    %c0_i32 = arith.constant 0 : i32
    %c0_i32_0 = arith.constant 0 : i32
    %c0_i32_1 = arith.constant 0 : i32
    return %c0_i32, %c0_i32_0 : i32, i32
  }
  func.func @transform_5(%arg0: i32) -> (i32, i32) {
    %c0_i32 = arith.constant 0 : i32
    %c0_i32_0 = arith.constant 0 : i32
    %c0_i32_1 = arith.constant 0 : i32
    return %c0_i32, %c0_i32_0 : i32, i32
  }
  func.func @transform_6(%arg0: i32) -> (i32, i32) {
    %c0_i32 = arith.constant 0 : i32
    %c0_i32_0 = arith.constant 0 : i32
    %c0_i32_1 = arith.constant 0 : i32
    return %c0_i32, %c0_i32_0 : i32, i32
  }
}

</mosaic_0001>

<llo_original>
// kernel: tpu_custom_call.1
$region0: #{tpu_custom_call.1}
  #allocation0 [shape = 'u32[]', space=smem, size = 0x4, offset = 0x4, fixed_abs, tag = 'smem constant byte address 0x4 - core index']
  #allocation1 [shape = 'u32[144,128]{1,0:T(1,128)}', space=vmem, size = 0x12000, scoped, tag = 'internal scratch']
  #allocation2 [shape = 'f32[2,32,64]{2,1,0:T(8,128)}', space=vmem, size = 0x8000, scoped, tag = 'scratch operand']
  #allocation3 [shape = 'f32[2,32,128]{2,1,0:T(8,128)}', space=vmem, size = 0x8000, scoped, tag = 'scratch operand']
  %s0 = inlined_call_operand.hbm [shape: f32[2,16,64], index: 0, kind: input, shape index: {}]
  %s1 = inlined_call_operand.hbm [shape: f32[3,64,128], index: 1, kind: input, shape index: {}]
  %s2 = inlined_call_operand.hbm [shape: f32[9,128,128], index: 2, kind: input, shape index: {}]
  %s3 = inlined_call_operand.vmem [shape: f32[4,128], index: 3, kind: input, shape index: {}]
  %s4 = inlined_call_operand.vmem [shape: f32[4,128], index: 4, kind: input, shape index: {}]
  %s5 = inlined_call_operand.hbm [shape: f32[128,128], index: 5, kind: input, shape index: {}]
  %s6 = inlined_call_operand.hbm [shape: f32[32,128], index: 6, kind: output, shape index: {}]
  %s7 = sld [smem:[#allocation0]]
  $region50: #{tpu_custom_call.1} parent=0
    _
  %s9 = ssub.s32 1, %s7
  %s10 = scalar_select 0, %s9, %s7
  $region1: #{tpu_custom_call.1} parent=0
    #allocation4 [shape = 'u8[16384]{0}', space=vmem, size = 0x4000, scoped, tag = 'input window, operand 0, single buffered']
    #allocation5 [shape = 's32[1]{0}', space=sflag, size = 0x4, scoped, tag = 'scoped memory for tpu_custom_call.1']
    #allocation6 [shape = 's32[1]{0}', space=sflag, size = 0x4, scoped, tag = 'scoped memory for tpu_custom_call.1']
    #allocation7 [shape = 'u8[98304]{0}', space=vmem, size = 0x18000, scoped, tag = 'input window, operand 1, single buffered']
    #allocation8 [shape = 's32[1]{0}', space=sflag, size = 0x4, scoped, tag = 'scoped memory for tpu_custom_call.1']
    #allocation9 [shape = 'u8[589824]{0}', space=vmem, size = 0x90000, scoped, tag = 'input window, operand 2, single buffered']
    #allocation10 [shape = 'u8[65536]{0}', space=vmem, size = 0x10000, scoped, tag = 'input window, operand 5, single buffered']
    #allocation11 [shape = 's32[1]{0}', space=sflag, size = 0x4, scoped, tag = 'scoped memory for tpu_custom_call.1']
    #allocation12 [shape = 'u8[16384]{0}', space=vmem, size = 0x4000, scoped, tag = 'output window, operand 0, single buffered']
    %11 = vsyncpa [#allocation5], 0
    %12 = vsyncpa [#allocation8], 0
    %13 = vsyncpa [#allocation11], 0
    %14 = vsyncpa [#allocation6], 0
    // Predicated region
    $region2: #{tpu_custom_call.1} parent=1 // pred_check
      _
    $region3: #{tpu_custom_call.1} parent=1 // pred_check_branch
      %16 = sbr.rel (0) target = $region5
    $region4: #{tpu_custom_call.1} parent=1 // pred_region
      %s18 = ssub.s32 512, 512
      %19 = vsyncadd [#allocation5], %s18
      %s20 = sshll.u32 [#allocation4], 4
      %s21 = int_to_ptr.vmem [resolvable:$true] %s20
      %26 = dma.hbm_to_vmem [thread:$0]  %s0, 512, %s21, [#allocation5], 128, 128, 8
    $region5: #{tpu_custom_call.1} parent=1 // pred_fallthru
      _
    // Predicated region
    $region6: #{tpu_custom_call.1} parent=1 // pred_check
      _
    $region7: #{tpu_custom_call.1} parent=1 // pred_check_branch
      %28 = sbr.rel (0) target = $region9
    $region8: #{tpu_custom_call.1} parent=1 // pred_region
      %s30 = ssub.s32 3072, 3072
      %31 = vsyncadd [#allocation8], %s30
      %s32 = sshll.u32 [#allocation7], 4
      %s33 = int_to_ptr.vmem [resolvable:$true] %s32
      %38 = dma.hbm_to_vmem [thread:$0]  %s1, 3072, %s33, [#allocation8], 128, 128, 8
    $region9: #{tpu_custom_call.1} parent=1 // pred_fallthru
      _
    // Predicated region
    $region10: #{tpu_custom_call.1} parent=1 // pred_check
      _
    $region11: #{tpu_custom_call.1} parent=1 // pred_check_branch
      %40 = sbr.rel (0) target = $region13
    $region12: #{tpu_custom_call.1} parent=1 // pred_region
      %s42 = ssub.s32 18432, 18432
      %43 = vsyncadd [#allocation8], %s42
      %s44 = sshll.u32 [#allocation9], 4
      %s45 = int_to_ptr.vmem [resolvable:$true] %s44
      %50 = dma.hbm_to_vmem [thread:$0]  %s2, 18432, %s45, [#allocation8], 128, 128, 8
    $region13: #{tpu_custom_call.1} parent=1 // pred_fallthru
      _
    // Predicated region
    $region14: #{tpu_custom_call.1} parent=1 // pred_check
      _
    $region15: #{tpu_custom_call.1} parent=1 // pred_check_branch
      %52 = sbr.rel (0) target = $region17
    $region16: #{tpu_custom_call.1} parent=1 // pred_region
      _
    $region17: #{tpu_custom_call.1} parent=1 // pred_fallthru
      _
    // Predicated region
    $region18: #{tpu_custom_call.1} parent=1 // pred_check
      _
    $region19: #{tpu_custom_call.1} parent=1 // pred_check_branch
      %54 = sbr.rel (0) target = $region21
    $region20: #{tpu_custom_call.1} parent=1 // pred_region
      _
    $region21: #{tpu_custom_call.1} parent=1 // pred_fallthru
      _
    // Predicated region
    $region22: #{tpu_custom_call.1} parent=1 // pred_check
      _
    $region23: #{tpu_custom_call.1} parent=1 // pred_check_branch
      %56 = sbr.rel (0) target = $region25
    $region24: #{tpu_custom_call.1} parent=1 // pred_region
      %s58 = ssub.s32 2048, 2048
      %59 = vsyncadd [#allocation11], %s58
      %s60 = sshll.u32 [#allocation10], 4
      %s61 = int_to_ptr.vmem [resolvable:$true] %s60
      %66 = dma.hbm_to_vmem [thread:$0]  %s5, 2048, %s61, [#allocation11], 128, 128, 8
    $region25: #{tpu_custom_call.1} parent=1 // pred_fallthru
      _
    // Predicated region
    $region26: #{tpu_custom_call.1} parent=1 // pred_check
      _
    $region27: #{tpu_custom_call.1} parent=1 // pred_check_branch
      %68 = sbr.rel (0) target = $region29
    $region28: #{tpu_custom_call.1} parent=1 // pred_region
      %69 = dma.done [#allocation5], 512
    $region29: #{tpu_custom_call.1} parent=1 // pred_fallthru
      _
    // Predicated region
    $region30: #{tpu_custom_call.1} parent=1 // pred_check
      _
    $region31: #{tpu_custom_call.1} parent=1 // pred_check_branch
      %71 = sbr.rel (0) target = $region33
    $region32: #{tpu_custom_call.1} parent=1 // pred_region
      %72 = dma.done [#allocation8], 3072
    $region33: #{tpu_custom_call.1} parent=1 // pred_fallthru
      _
    // Predicated region
    $region34: #{tpu_custom_call.1} parent=1 // pred_check
      _
    $region35: #{tpu_custom_call.1} parent=1 // pred_check_branch
      %74 = sbr.rel (0) target = $region37
    $region36: #{tpu_custom_call.1} parent=1 // pred_region
      %75 = dma.done [#allocation8], 18432
    $region37: #{tpu_custom_call.1} parent=1 // pred_fallthru
      _
    // Predicated region
    $region38: #{tpu_custom_call.1} parent=1 // pred_check
      _
    $region39: #{tpu_custom_call.1} parent=1 // pred_check_branch
      %77 = sbr.rel (0) target = $region41
    $region40: #{tpu_custom_call.1} parent=1 // pred_region
      %78 = dma.done [#allocation11], 2048
    $region41: #{tpu_custom_call.1} parent=1 // pred_fallthru
      _
    %vm79 = vcmask 523264
    %80 = vst.msk [vmem:[#allocation2] sm:$0xff] %vm79, 0.0
    %81 = vst.msk [vmem:[#allocation2 + $0x8] sm:$0xff] %vm79, 0.0
    %82 = vst.msk [vmem:[#allocation2 + $0x10] sm:$0xff] %vm79, 0.0
    %83 = vst.msk [vmem:[#allocation2 + $0x18] sm:$0xff] %vm79, 0.0
    %84 = vst.msk [vmem:[#allocation2 + $0x20] sm:$0xff] %vm79, 0.0
    %85 = vst.msk [vmem:[#allocation2 + $0x28] sm:$0xff] %vm79, 0.0
    %86 = vst.msk [vmem:[#allocation2 + $0x30] sm:$0xff] %vm79, 0.0
    %87 = vst.msk [vmem:[#allocation2 + $0x38] sm:$0xff] %vm79, 0.0
    %88 = vst [vmem:[#allocation3] sm:$0xff] 0.0
    %89 = vst [vmem:[#allocation3 + $0x8] sm:$0xff] 0.0
    %90 = vst [vmem:[#allocation3 + $0x10] sm:$0xff] 0.0
    %91 = vst [vmem:[#allocation3 + $0x18] sm:$0xff] 0.0
    %92 = vst [vmem:[#allocation3 + $0x20] sm:$0xff] 0.0
    %93 = vst [vmem:[#allocation3 + $0x28] sm:$0xff] 0.0
    %94 = vst [vmem:[#allocation3 + $0x30] sm:$0xff] 0.0
    %95 = vst [vmem:[#allocation3 + $0x38] sm:$0xff] 0.0
    %v96 = vld [vmem:[#allocation4] sm:$0xff]
    %v97 = vld [vmem:[#allocation4 + $0x8] sm:$0xff]
    %v98 = vld [vmem:[#allocation4 + $0x10] sm:$0xff]
    %v99 = vld [vmem:[#allocation4 + $0x18] sm:$0xff]
    %100 = vst.msk [vmem:[#allocation2 + $0x8] sm:$0xff] %vm79, %v96
    %101 = vst.msk [vmem:[#allocation2 + $0x10] sm:$0xff] %vm79, %v97
    %102 = vst.msk [vmem:[#allocation2 + $0x28] sm:$0xff] %vm79, %v98
    %103 = vst.msk [vmem:[#allocation2 + $0x30] sm:$0xff] %vm79, %v99
    %v104 = vld [vmem:[#allocation10] sm:$0xff]
    %v105 = vld [vmem:[#allocation10 + $0x8] sm:$0xff]
    %v106 = vld [vmem:[#allocation10 + $0x10] sm:$0xff]
    %v107 = vld [vmem:[#allocation10 + $0x18] sm:$0xff]
    %v108 = vld [vmem:[#allocation10 + $0x20] sm:$0xff]
    %v109 = vld [vmem:[#allocation10 + $0x28] sm:$0xff]
    %v110 = vld [vmem:[#allocation10 + $0x30] sm:$0xff]
    %v111 = vld [vmem:[#allocation10 + $0x38] sm:$0xff]
    %v112 = vld [vmem:[#allocation10 + $0x40] sm:$0xff]
    %v113 = vld [vmem:[#allocation10 + $0x48] sm:$0xff]
    %v114 = vld [vmem:[#allocation10 + $0x50] sm:$0xff]
    %v115 = vld [vmem:[#allocation10 + $0x58] sm:$0xff]
    %v116 = vld [vmem:[#allocation10 + $0x60] sm:$0xff]
    %v117 = vld [vmem:[#allocation10 + $0x68] sm:$0xff]
    %v118 = vld [vmem:[#allocation10 + $0x70] sm:$0xff]
    %v119 = vld [vmem:[#allocation10 + $0x78] sm:$0xff]
    %v120 = vld [vmem:[#allocation7] sm:$0xff]
    %v121 = vld [vmem:[#allocation7 + $0x8] sm:$0xff]
    %v122 = vld [vmem:[#allocation7 + $0x10] sm:$0xff]
    %v123 = vld [vmem:[#allocation7 + $0x18] sm:$0xff]
    %v124 = vld [vmem:[#allocation7 + $0x20] sm:$0xff]
    %v125 = vld [vmem:[#allocation7 + $0x28] sm:$0xff]
    %v126 = vld [vmem:[#allocation7 + $0x30] sm:$0xff]
    %v127 = vld [vmem:[#allocation7 + $0x38] sm:$0xff]
    %v128 = vld [vmem:[#allocation2 + $0x7] sm:$0xff]
    %v129 = vld [vmem:[#allocation2 + $0xf] sm:$0xff]
    %v130 = vld [vmem:[#allocation2 + $0x27] sm:$0xff]
    %v131 = vld [vmem:[#allocation2 + $0x2f] sm:$0xff]
    %s132 = scalar_lea.vmem [#allocation7], 64
    %v133 = vld [vmem:[%s132] sm:$0xff]
    %v134 = vld [vmem:[%s132 + $0x8] sm:$0xff]
    %v135 = vld [vmem:[%s132 + $0x10] sm:$0xff]
    %v136 = vld [vmem:[%s132 + $0x18] sm:$0xff]
    %v137 = vld [vmem:[%s132 + $0x20] sm:$0xff]
    %v138 = vld [vmem:[%s132 + $0x28] sm:$0xff]
    %v139 = vld [vmem:[%s132 + $0x30] sm:$0xff]
    %v140 = vld [vmem:[%s132 + $0x38] sm:$0xff]
    %v141 = vld [vmem:[#allocation2 + $0x8] sm:$0xff]
    %v142 = vld [vmem:[#allocation2 + $0x10] sm:$0xff]
    %v143 = vld [vmem:[#allocation2 + $0x28] sm:$0xff]
    %v144 = vld [vmem:[#allocation2 + $0x30] sm:$0xff]
    %v146 = vsel %vm79, %v141, 0
    %v149 = vsel %vm79, %v142, 0
    %v152 = vsel %vm79, %v143, 0
    %v155 = vsel %vm79, %v144, 0
    %157 = vmatprep.subr.mxu0 0.0
    %158 = vmatpush1.msra.mxu0 %v133
    %159 = vmatprep.subr.mxu0 0.0
    %160 = vmatpush1.msra.mxu0 %v134
    %161 = vmatprep.subr.mxu0 0.0
    %162 = vmatpush1.msra.mxu0 %v135
    %163 = vmatprep.subr.mxu0 0.0
    %164 = vmatpush1.msra.mxu0 %v136
    %165 = vmatprep.subr.mxu0 0.0
    %166 = vmatpush1.msra.mxu0 %v137
    %167 = vmatprep.subr.mxu0 0.0
    %168 = vmatpush1.msra.mxu0 %v138
    %169 = vmatprep.subr.mxu0 0.0
    %170 = vmatpush1.msra.mxu0 %v139
    %171 = vmatprep.subr.mxu0 0.0
    %172 = vmatpush1.msra.mxu0 %v140
    %173 = vmatprep.subr.mxu0 0.0
    %174 = vmatpush1.msra.mxu0 0.0
    %175 = vmatprep.subr.mxu0 0.0
    %176 = vmatpush1.msra.mxu0 0.0
    %177 = vmatprep.subr.mxu0 0.0
    %178 = vmatpush1.msra.mxu0 0.0
    %179 = vmatprep.subr.mxu0 0.0
    %180 = vmatpush1.msra.mxu0 0.0
    %181 = vmatprep.subr.mxu0 0.0
    %182 = vmatpush1.msra.mxu0 0.0
    %183 = vmatprep.subr.mxu0 0.0
    %184 = vmatpush1.msra.mxu0 0.0
    %185 = vmatprep.subr.mxu0 0.0
    %186 = vmatpush1.msra.mxu0 0.0
    %187 = vmatprep.subr.mxu0 0.0
    %188 = vmatpush1.msra.mxu0 0.0
    %189 = vmatprep.subr.mxu0 0.0
    %190 = vmatpush1.msra.mxu0 0.0
    %191 = vmatprep.subr.mxu0 0.0
    %192 = vmatpush1.msra.mxu0 0.0
    %193 = vmatprep.subr.mxu0 0.0
    %194 = vmatpush1.msra.mxu0 0.0
    %195 = vmatprep.subr.mxu0 0.0
    %196 = vmatpush1.msra.mxu0 0.0
    %197 = vmatprep.subr.mxu0 0.0
    %198 = vmatpush1.msra.mxu0 0.0
    %199 = vmatprep.subr.mxu0 0.0
    %200 = vmatpush1.msra.mxu0 0.0
    %201 = vmatprep.subr.mxu0 0.0
    %202 = vmatpush1.msra.mxu0 0.0
    %203 = vmatprep.subr.mxu0 0.0
    %204 = vmatpush1.msra.mxu0 0.0
    %205 = vmatprep.subr.mxu0 0.0
    %206 = vmatpush1.msra.mxu0 0.0
    %207 = vmatprep.subr.mxu0 0.0
    %208 = vmatpush1.msra.mxu0 0.0
    %209 = vmatprep.subr.mxu0 0.0
    %210 = vmatpush1.msra.mxu0 0.0
    %211 = vmatprep.subr.mxu0 0.0
    %212 = vmatpush1.msra.mxu0 0.0
    %213 = vmatprep.subr.mxu0 0.0
    %214 = vmatpush1.msra.mxu0 0.0
    %215 = vmatprep.subr.mxu0 0.0
    %216 = vmatpush1.msra.mxu0 0.0
    %217 = vmatprep.subr.mxu0 0.0
    %218 = vmatpush1.msra.mxu0 0.0
    %219 = vmatprep.subr.mxu0 0.0
    %220 = vmatpush1.msra.mxu0 0.0
    %221 = vmatprep.mubr.f32.mxu0 0.0
    %222 = vmatmul.mubr.f32.gmra.mrb[0].mxu0 %v146
    %v223 = vpop.f32.mrb[0].mxu0
    %v224 = vadd.f32 0.0, %v223
    %v225 = vpop.f32.mrb[0].mxu0
    %226 = vmatprep.mubr.f32.mxu0 0.0
    %227 = vmatmul.mubr.f32.gmra.mrb[0].mxu0 %v149
    %v228 = vpop.f32.mrb[0].mxu0
    %v229 = vadd.f32 0.0, %v228
    %v230 = vpop.f32.mrb[0].mxu0
    %231 = vmatprep.mubr.f32.mxu0 0.0
    %232 = vmatmul.mubr.f32.gmra.mrb[0].mxu0 %v152
    %v233 = vpop.f32.mrb[0].mxu0
    %v234 = vadd.f32 0.0, %v233
    %v235 = vpop.f32.mrb[0].mxu0
    %236 = vmatprep.mubr.f32.mxu0 0.0
    %237 = vmatmul.mubr.f32.gmra.mrb[0].mxu0 %v155
    %v238 = vpop.f32.mrb[0].mxu0
    %v239 = vadd.f32 0.0, %v238
    %v240 = vpop.f32.mrb[0].mxu0
    %241 = vdwg.mxu0
    %v243 = vsel %vm79, %v128, 0
    %v246 = vsel %vm79, %v129, 0
    %v249 = vsel %vm79, %v130, 0
    %v252 = vsel %vm79, %v131, 0
    %254 = vmatprep.subr.mxu0 0.0
    %255 = vmatpush1.msra.mxu0 %v120
    %256 = vmatprep.subr.mxu0 0.0
    %257 = vmatpush1.msra.mxu0 %v121
    %258 = vmatprep.subr.mxu0 0.0
    %259 = vmatpush1.msra.mxu0 %v122
    %260 = vmatprep.subr.mxu0 0.0
    %261 = vmatpush1.msra.mxu0 %v123
    %262 = vmatprep.subr.mxu0 0.0
    %263 = vmatpush1.msra.mxu0 %v124
    %264 = vmatprep.subr.mxu0 0.0
    %265 = vmatpush1.msra.mxu0 %v125
    %266 = vmatprep.subr.mxu0 0.0
    %267 = vmatpush1.msra.mxu0 %v126
    %268 = vmatprep.subr.mxu0 0.0
    %269 = vmatpush1.msra.mxu0 %v127
    %270 = vmatprep.subr.mxu0 0.0
    %271 = vmatpush1.msra.mxu0 0.0
    %272 = vmatprep.subr.mxu0 0.0
    %273 = vmatpush1.msra.mxu0 0.0
    %274 = vmatprep.subr.mxu0 0.0
    %275 = vmatpush1.msra.mxu0 0.0
    %276 = vmatprep.subr.mxu0 0.0
    %277 = vmatpush1.msra.mxu0 0.0
    %278 = vmatprep.subr.mxu0 0.0
    %279 = vmatpush1.msra.mxu0 0.0
    %280 = vmatprep.subr.mxu0 0.0
    %281 = vmatpush1.msra.mxu0 0.0
    %282 = vmatprep.subr.mxu0 0.0
    %283 = vmatpush1.msra.mxu0 0.0
    %284 = vmatprep.subr.mxu0 0.0
    %285 = vmatpush1.msra.mxu0 0.0
    %286 = vmatprep.subr.mxu0 0.0
    %287 = vmatpush1.msra.mxu0 0.0
    %288 = vmatprep.subr.mxu0 0.0
    %289 = vmatpush1.msra.mxu0 0.0
    %290 = vmatprep.subr.mxu0 0.0
    %291 = vmatpush1.msra.mxu0 0.0
    %292 = vmatprep.subr.mxu0 0.0
    %293 = vmatpush1.msra.mxu0 0.0
    %294 = vmatprep.subr.mxu0 0.0
    %295 = vmatpush1.msra.mxu0 0.0
    %296 = vmatprep.subr.mxu0 0.0
    %297 = vmatpush1.msra.mxu0 0.0
    %298 = vmatprep.subr.mxu0 0.0
    %299 = vmatpush1.msra.mxu0 0.0
    %300 = vmatprep.subr.mxu0 0.0
    %301 = vmatpush1.msra.mxu0 0.0
    %302 = vmatprep.subr.mxu0 0.0
    %303 = vmatpush1.msra.mxu0 0.0
    %304 = vmatprep.subr.mxu0 0.0
    %305 = vmatpush1.msra.mxu0 0.0
    %306 = vmatprep.subr.mxu0 0.0
    %307 = vmatpush1.msra.mxu0 0.0
    %308 = vmatprep.subr.mxu0 0.0
    %309 = vmatpush1.msra.mxu0 0.0
    %310 = vmatprep.subr.mxu0 0.0
    %311 = vmatpush1.msra.mxu0 0.0
    %312 = vmatprep.subr.mxu0 0.0
    %313 = vmatpush1.msra.mxu0 0.0
    %314 = vmatprep.subr.mxu0 0.0
    %315 = vmatpush1.msra.mxu0 0.0
    %316 = vmatprep.subr.mxu0 0.0
    %317 = vmatpush1.msra.mxu0 0.0
    %318 = vmatprep.mubr.f32.mxu0 0.0
    %319 = vmatmul.mubr.f32.gmra.mrb[0].mxu0 %v243
    %v320 = vpop.f32.mrb[0].mxu0
    %v321 = vadd.f32 %v224, %v320
    %v322 = vpop.f32.mrb[0].mxu0
    %323 = vmatprep.mubr.f32.mxu0 0.0
    %324 = vmatmul.mubr.f32.gmra.mrb[0].mxu0 %v246
    %v325 = vpop.f32.mrb[0].mxu0
    %v326 = vadd.f32 %v229, %v325
    %v327 = vpop.f32.mrb[0].mxu0
    %328 = vmatprep.mubr.f32.mxu0 0.0
    %329 = vmatmul.mubr.f32.gmra.mrb[0].mxu0 %v249
    %v330 = vpop.f32.mrb[0].mxu0
    %v331 = vadd.f32 %v234, %v330
    %v332 = vpop.f32.mrb[0].mxu0
    %333 = vmatprep.mubr.f32.mxu0 0.0
    %334 = vmatmul.mubr.f32.gmra.mrb[0].mxu0 %v252
    %v335 = vpop.f32.mrb[0].mxu0
    %v336 = vadd.f32 %v239, %v335
    %v337 = vpop.f32.mrb[0].mxu0
    %338 = vdwg.mxu0
    %s339 = scalar_lea.vmem [#allocation7], 128
    %v340 = vld [vmem:[%s339] sm:$0xff]
    %v341 = vld [vmem:[%s339 + $0x8] sm:$0xff]
    %v342 = vld [vmem:[%s339 + $0x10] sm:$0xff]
    %v343 = vld [vmem:[%s339 + $0x18] sm:$0xff]
    %v344 = vld [vmem:[%s339 + $0x20] sm:$0xff]
    %v345 = vld [vmem:[%s339 + $0x28] sm:$0xff]
    %v346 = vld [vmem:[%s339 + $0x30] sm:$0xff]
    %v347 = vld [vmem:[%s339 + $0x38] sm:$0xff]
    %v348 = vld [vmem:[#allocation2 + $0x9] sm:$0xff]
    %v349 = vld [vmem:[#allocation2 + $0x11] sm:$0xff]
    %v350 = vld [vmem:[#allocation2 + $0x29] sm:$0xff]
    %v351 = vld [vmem:[#allocation2 + $0x31] sm:$0xff]
    %v353 = vsel %vm79, %v348, 0
    %v356 = vsel %vm79, %v349, 0
    %v359 = vsel %vm79, %v350, 0
    %v362 = vsel %vm79, %v351, 0
    %364 = vmatprep.subr.mxu0 0.0
    %365 = vmatpush1.msra.mxu0 %v340
    %366 = vmatprep.subr.mxu0 0.0
    %367 = vmatpush1.msra.mxu0 %v341
    %368 = vmatprep.subr.mxu0 0.0
    %369 = vmatpush1.msra.mxu0 %v342
    %370 = vmatprep.subr.mxu0 0.0
    %371 = vmatpush1.msra.mxu0 %v343
    %372 = vmatprep.subr.mxu0 0.0
    %373 = vmatpush1.msra.mxu0 %v344
    %374 = vmatprep.subr.mxu0 0.0
    %375 = vmatpush1.msra.mxu0 %v345
    %376 = vmatprep.subr.mxu0 0.0
    %377 = vmatpush1.msra.mxu0 %v346
    %378 = vmatprep.subr.mxu0 0.0
    %379 = vmatpush1.msra.mxu0 %v347
    %380 = vmatprep.subr.mxu0 0.0
    %381 = vmatpush1.msra.mxu0 0.0
    %382 = vmatprep.subr.mxu0 0.0
    %383 = vmatpush1.msra.mxu0 0.0
    %384 = vmatprep.subr.mxu0 0.0
    %385 = vmatpush1.msra.mxu0 0.0
    %386 = vmatprep.subr.mxu0 0.0
    %387 = vmatpush1.msra.mxu0 0.0
    %388 = vmatprep.subr.mxu0 0.0
    %389 = vmatpush1.msra.mxu0 0.0
    %390 = vmatprep.subr.mxu0 0.0
    %391 = vmatpush1.msra.mxu0 0.0
    %392 = vmatprep.subr.mxu0 0.0
    %393 = vmatpush1.msra.mxu0 0.0
    %394 = vmatprep.subr.mxu0 0.0
    %395 = vmatpush1.msra.mxu0 0.0
    %396 = vmatprep.subr.mxu0 0.0
    %397 = vmatpush1.msra.mxu0 0.0
    %398 = vmatprep.subr.mxu0 0.0
    %399 = vmatpush1.msra.mxu0 0.0
    %400 = vmatprep.subr.mxu0 0.0
    %401 = vmatpush1.msra.mxu0 0.0
    %402 = vmatprep.subr.mxu0 0.0
    %403 = vmatpush1.msra.mxu0 0.0
    %404 = vmatprep.subr.mxu0 0.0
    %405 = vmatpush1.msra.mxu0 0.0
    %406 = vmatprep.subr.mxu0 0.0
    %407 = vmatpush1.msra.mxu0 0.0
    %408 = vmatprep.subr.mxu0 0.0
    %409 = vmatpush1.msra.mxu0 0.0
    %410 = vmatprep.subr.mxu0 0.0
    %411 = vmatpush1.msra.mxu0 0.0
    %412 = vmatprep.subr.mxu0 0.0
    %413 = vmatpush1.msra.mxu0 0.0
    %414 = vmatprep.subr.mxu0 0.0
    %415 = vmatpush1.msra.mxu0 0.0
    %416 = vmatprep.subr.mxu0 0.0
    %417 = vmatpush1.msra.mxu0 0.0
    %418 = vmatprep.subr.mxu0 0.0
    %419 = vmatpush1.msra.mxu0 0.0
    %420 = vmatprep.subr.mxu0 0.0
    %421 = vmatpush1.msra.mxu0 0.0
    %422 = vmatprep.subr.mxu0 0.0
    %423 = vmatpush1.msra.mxu0 0.0
    %424 = vmatprep.subr.mxu0 0.0
    %425 = vmatpush1.msra.mxu0 0.0
    %426 = vmatprep.subr.mxu0 0.0
    %427 = vmatpush1.msra.mxu0 0.0
    %428 = vmatprep.mubr.f32.mxu0 0.0
    %429 = vmatmul.mubr.f32.gmra.mrb[0].mxu0 %v353
    %v430 = vpop.f32.mrb[0].mxu0
    %v431 = vadd.f32 0.0, %v430
    %v432 = vpop.f32.mrb[0].mxu0
    %433 = vmatprep.mubr.f32.mxu0 0.0
    %434 = vmatmul.mubr.f32.gmra.mrb[0].mxu0 %v356
    %v435 = vpop.f32.mrb[0].mxu0
    %v436 = vadd.f32 0.0, %v435
    %v437 = vpop.f32.mrb[0].mxu0
    %438 = vmatprep.mubr.f32.mxu0 0.0
    %439 = vmatmul.mubr.f32.gmra.mrb[0].mxu0 %v359
    %v440 = vpop.f32.mrb[0].mxu0
    %v441 = vadd.f32 0.0, %v440
    %v442 = vpop.f32.mrb[0].mxu0
    %443 = vmatprep.mubr.f32.mxu0 0.0
    %444 = vmatmul.mubr.f32.gmra.mrb[0].mxu0 %v362
    %v445 = vpop.f32.mrb[0].mxu0
    %v446 = vadd.f32 0.0, %v445
    %v447 = vpop.f32.mrb[0].mxu0
    %448 = vdwg.mxu0
    %v449 = vadd.f32 %v321, %v431
    %v450 = vadd.f32 %v326, %v436
    %v451 = vadd.f32 %v331, %v441
    %v452 = vadd.f32 %v336, %v446
    %v453 = vadd.f32 %v449, %v450
    %v454 = vadd.f32 %v453, %v451
    %v455 = vadd.f32 %v454, %v452
    %v456 = vrot.slane %v455, 4
    %v457 = vadd.f32 %v455, %v456
    %v458 = vrot.slane %v457, 2
    %v459 = vadd.f32 %v457, %v458
    %v460 = vrot.slane %v459, 1
    %v461 = vadd.f32 %v459, %v460
    %v462 = vmul.f32 %v449, %v449
    %v463 = vmul.f32 %v450, %v450
    %v464 = vmul.f32 %v451, %v451
    %v465 = vmul.f32 %v452, %v452
    %v466 = vadd.f32 %v462, %v463
    %v467 = vadd.f32 %v466, %v464
    %v468 = vadd.f32 %v467, %v465
    %v469 = vrot.slane %v468, 4
    %v470 = vadd.f32 %v468, %v469
    %v471 = vrot.slane %v470, 2
    %v472 = vadd.f32 %v470, %v471
    %v473 = vrot.slane %v472, 1
    %v474 = vadd.f32 %v472, %v473
    %475 = vmatprep.subr.mxu0 0.0
    %476 = vmatpush1.msra.mxu0 %v104
    %477 = vmatprep.subr.mxu0 0.0
    %478 = vmatpush1.msra.mxu0 %v105
    %479 = vmatprep.subr.mxu0 0.0
    %480 = vmatpush1.msra.mxu0 %v106
    %481 = vmatprep.subr.mxu0 0.0
    %482 = vmatpush1.msra.mxu0 %v107
    %483 = vmatprep.subr.mxu0 0.0
    %484 = vmatpush1.msra.mxu0 %v108
    %485 = vmatprep.subr.mxu0 0.0
    %486 = vmatpush1.msra.mxu0 %v109
    %487 = vmatprep.subr.mxu0 0.0
    %488 = vmatpush1.msra.mxu0 %v110
    %489 = vmatprep.subr.mxu0 0.0
    %490 = vmatpush1.msra.mxu0 %v111
    %491 = vmatprep.subr.mxu0 0.0
    %492 = vmatpush1.msra.mxu0 %v112
    %493 = vmatprep.subr.mxu0 0.0
    %494 = vmatpush1.msra.mxu0 %v113
    %495 = vmatprep.subr.mxu0 0.0
    %496 = vmatpush1.msra.mxu0 %v114
    %497 = vmatprep.subr.mxu0 0.0
    %498 = vmatpush1.msra.mxu0 %v115
    %499 = vmatprep.subr.mxu0 0.0
    %500 = vmatpush1.msra.mxu0 %v116
    %501 = vmatprep.subr.mxu0 0.0
    %502 = vmatpush1.msra.mxu0 %v117
    %503 = vmatprep.subr.mxu0 0.0
    %504 = vmatpush1.msra.mxu0 %v118
    %505 = vmatprep.subr.mxu0 0.0
    %506 = vmatpush1.msra.mxu0 %v119
    %507 = vmatprep.subr.mxu0 0.0
    %508 = vmatpush1.msra.mxu0 0.0
    %509 = vmatprep.subr.mxu0 0.0
    %510 = vmatpush1.msra.mxu0 0.0
    %511 = vmatprep.subr.mxu0 0.0
    %512 = vmatpush1.msra.mxu0 0.0
    %513 = vmatprep.subr.mxu0 0.0
    %514 = vmatpush1.msra.mxu0 0.0
    %515 = vmatprep.subr.mxu0 0.0
    %516 = vmatpush1.msra.mxu0 0.0
    %517 = vmatprep.subr.mxu0 0.0
    %518 = vmatpush1.msra.mxu0 0.0
    %519 = vmatprep.subr.mxu0 0.0
    %520 = vmatpush1.msra.mxu0 0.0
    %521 = vmatprep.subr.mxu0 0.0
    %522 = vmatpush1.msra.mxu0 0.0
    %523 = vmatprep.subr.mxu0 0.0
    %524 = vmatpush1.msra.mxu0 0.0
    %525 = vmatprep.subr.mxu0 0.0
    %526 = vmatpush1.msra.mxu0 0.0
    %527 = vmatprep.subr.mxu0 0.0
    %528 = vmatpush1.msra.mxu0 0.0
    %529 = vmatprep.subr.mxu0 0.0
    %530 = vmatpush1.msra.mxu0 0.0
    %531 = vmatprep.subr.mxu0 0.0
    %532 = vmatpush1.msra.mxu0 0.0
    %533 = vmatprep.subr.mxu0 0.0
    %534 = vmatpush1.msra.mxu0 0.0
    %535 = vmatprep.subr.mxu0 0.0
    %536 = vmatpush1.msra.mxu0 0.0
    %537 = vmatprep.subr.mxu0 0.0
    %538 = vmatpush1.msra.mxu0 0.0
    %539 = vmatprep.mubr.f32.mxu0 0.0
    %540 = vmatmul.mubr.f32.gmra.mrb[0].mxu0 %v461
    %v541 = vpop.f32.mrb[0].mxu0
    %v542 = vadd.f32 0.0, %v541
    %v543 = vpop.f32.mrb[0].mxu0
    %544 = vdwg.mxu0
    %v545 = vmul.f32 %v542, 0.001953125
    %546 = vmatprep.subr.mxu0 0.0
    %547 = vmatpush1.msra.mxu0 %v104
    %548 = vmatprep.subr.mxu0 0.0
    %549 = vmatpush1.msra.mxu0 %v105
    %550 = vmatprep.subr.mxu0 0.0
    %551 = vmatpush1.msra.mxu0 %v106
    %552 = vmatprep.subr.mxu0 0.0
    %553 = vmatpush1.msra.mxu0 %v107
    %554 = vmatprep.subr.mxu0 0.0
    %555 = vmatpush1.msra.mxu0 %v108
    %556 = vmatprep.subr.mxu0 0.0
    %557 = vmatpush1.msra.mxu0 %v109
    %558 = vmatprep.subr.mxu0 0.0
    %559 = vmatpush1.msra.mxu0 %v110
    %560 = vmatprep.subr.mxu0 0.0
    %561 = vmatpush1.msra.mxu0 %v111
    %562 = vmatprep.subr.mxu0 0.0
    %563 = vmatpush1.msra.mxu0 %v112
    %564 = vmatprep.subr.mxu0 0.0
    %565 = vmatpush1.msra.mxu0 %v113
    %566 = vmatprep.subr.mxu0 0.0
    %567 = vmatpush1.msra.mxu0 %v114
    %568 = vmatprep.subr.mxu0 0.0
    %569 = vmatpush1.msra.mxu0 %v115
    %570 = vmatprep.subr.mxu0 0.0
    %571 = vmatpush1.msra.mxu0 %v116
    %572 = vmatprep.subr.mxu0 0.0
    %573 = vmatpush1.msra.mxu0 %v117
    %574 = vmatprep.subr.mxu0 0.0
    %575 = vmatpush1.msra.mxu0 %v118
    %576 = vmatprep.subr.mxu0 0.0
    %577 = vmatpush1.msra.mxu0 %v119
    %578 = vmatprep.subr.mxu0 0.0
    %579 = vmatpush1.msra.mxu0 0.0
    %580 = vmatprep.subr.mxu0 0.0
    %581 = vmatpush1.msra.mxu0 0.0
    %582 = vmatprep.subr.mxu0 0.0
    %583 = vmatpush1.msra.mxu0 0.0
    %584 = vmatprep.subr.mxu0 0.0
    %585 = vmatpush1.msra.mxu0 0.0
    %586 = vmatprep.subr.mxu0 0.0
    %587 = vmatpush1.msra.mxu0 0.0
    %588 = vmatprep.subr.mxu0 0.0
    %589 = vmatpush1.msra.mxu0 0.0
    %590 = vmatprep.subr.mxu0 0.0
    %591 = vmatpush1.msra.mxu0 0.0
    %592 = vmatprep.subr.mxu0 0.0
    %593 = vmatpush1.msra.mxu0 0.0
    %594 = vmatprep.subr.mxu0 0.0
    %595 = vmatpush1.msra.mxu0 0.0
    %596 = vmatprep.subr.mxu0 0.0
    %597 = vmatpush1.msra.mxu0 0.0
    %598 = vmatprep.subr.mxu0 0.0
    %599 = vmatpush1.msra.mxu0 0.0
    %600 = vmatprep.subr.mxu0 0.0
    %601 = vmatpush1.msra.mxu0 0.0
    %602 = vmatprep.subr.mxu0 0.0
    %603 = vmatpush1.msra.mxu0 0.0
    %604 = vmatprep.subr.mxu0 0.0
    %605 = vmatpush1.msra.mxu0 0.0
    %606 = vmatprep.subr.mxu0 0.0
    %607 = vmatpush1.msra.mxu0 0.0
    %608 = vmatprep.subr.mxu0 0.0
    %609 = vmatpush1.msra.mxu0 0.0
    %610 = vmatprep.mubr.f32.mxu0 0.0
    %611 = vmatmul.mubr.f32.gmra.mrb[0].mxu0 %v474
    %v612 = vpop.f32.mrb[0].mxu0
    %v613 = vadd.f32 0.0, %v612
    %v614 = vpop.f32.mrb[0].mxu0
    %615 = vdwg.mxu0
    %v616 = vmul.f32 %v613, 0.001953125
    %v617 = vmul.f32 %v545, %v545
    %v618 = vsub.f32 %v616, %v617
    %v619 = vld [vmem:[%s3] sm:$0x1]
    %v620 = vadd.f32 %v618, 1e-05
    %v621 = vrsqrt.pop %v620
    %v622 = vmul.f32 %v619, %v621
    %v623 = vld [vmem:[%s4] sm:$0x1]
    %v624 = vmul.f32 %v545, %v622
    %v625 = vsub.f32 %v623, %v624
    %v626 = vlaneseq
    %v627 = vshrl.u32 %v626, 7
    %v628 = vsub.s32 0, %v627
    %v629 = vrot.slane %v622, %v628
    %v630 = vmul.f32 %v449, %v629
    %v631 = vmul.f32 %v450, %v629
    %v632 = vmul.f32 %v451, %v629
    %v633 = vmul.f32 %v452, %v629
    %v634 = vlaneseq
    %v635 = vshrl.u32 %v634, 7
    %v636 = vsub.s32 0, %v635
    %v637 = vrot.slane %v625, %v636
    %v638 = vadd.f32 %v630, %v637
    %v639 = vadd.f32 %v631, %v637
    %v640 = vadd.f32 %v632, %v637
    %v641 = vadd.f32 %v633, %v637
    %v642 = vmax.f32 %v638, 0.0
    %v643 = vmax.f32 %v639, 0.0
    %v644 = vmax.f32 %v640, 0.0
    %v645 = vmax.f32 %v641, 0.0
    %646 = vst [vmem:[#allocation3 + $0x8] sm:$0xff] %v642
    %647 = vst [vmem:[#allocation3 + $0x10] sm:$0xff] %v643
    %648 = vst [vmem:[#allocation3 + $0x28] sm:$0xff] %v644
    %649 = vst [vmem:[#allocation3 + $0x30] sm:$0xff] %v645
    %v650 = vld [vmem:[#allocation9] sm:$0xff]
    %v651 = vld [vmem:[#allocation9 + $0x8] sm:$0xff]
    %v652 = vld [vmem:[#allocation9 + $0x10] sm:$0xff]
    %v653 = vld [vmem:[#allocation9 + $0x18] sm:$0xff]
    %v654 = vld [vmem:[#allocation9 + $0x20] sm:$0xff]
    %v655 = vld [vmem:[#allocation9 + $0x28] sm:$0xff]
    %v656 = vld [vmem:[#allocation9 + $0x30] sm:$0xff]
    %v657 = vld [vmem:[#allocation9 + $0x38] sm:$0xff]
    %v658 = vld [vmem:[#allocation9 + $0x40] sm:$0xff]
    %v659 = vld [vmem:[#allocation9 + $0x48] sm:$0xff]
    %v660 = vld [vmem:[#allocation9 + $0x50] sm:$0xff]
    %v661 = vld [vmem:[#allocation9 + $0x58] sm:$0xff]
    %v662 = vld [vmem:[#allocation9 + $0x60] sm:$0xff]
    %v663 = vld [vmem:[#allocation9 + $0x68] sm:$0xff]
    %v664 = vld [vmem:[#allocation9 + $0x70] sm:$0xff]
    %v665 = vld [vmem:[#allocation9 + $0x78] sm:$0xff]
    %v666 = vld [vmem:[#allocation3 + $0x7] sm:$0xff]
    %v667 = vld [vmem:[#allocation3 + $0xf] sm:$0xff]
    %v668 = vld [vmem:[#allocation3 + $0x27] sm:$0xff]
    %v669 = vld [vmem:[#allocation3 + $0x2f] sm:$0xff]
    %s670 = scalar_lea.vmem [#allocation9], 128
    %v671 = vld [vmem:[%s670] sm:$0xff]
    %v672 = vld [vmem:[%s670 + $0x8] sm:$0xff]
    %v673 = vld [vmem:[%s670 + $0x10] sm:$0xff]
    %v674 = vld [vmem:[%s670 + $0x18] sm:$0xff]
    %v675 = vld [vmem:[%s670 + $0x20] sm:$0xff]
    %v676 = vld [vmem:[%s670 + $0x28] sm:$0xff]
    %v677 = vld [vmem:[%s670 + $0x30] sm:$0xff]
    %v678 = vld [vmem:[%s670 + $0x38] sm:$0xff]
    %v679 = vld [vmem:[%s670 + $0x40] sm:$0xff]
    %v680 = vld [vmem:[%s670 + $0x48] sm:$0xff]
    %v681 = vld [vmem:[%s670 + $0x50] sm:$0xff]
    %v682 = vld [vmem:[%s670 + $0x58] sm:$0xff]
    %v683 = vld [vmem:[%s670 + $0x60] sm:$0xff]
    %v684 = vld [vmem:[%s670 + $0x68] sm:$0xff]
    %v685 = vld [vmem:[%s670 + $0x70] sm:$0xff]
    %v686 = vld [vmem:[%s670 + $0x78] sm:$0xff]
    %v687 = vld [vmem:[#allocation3 + $0x8] sm:$0xff]
    %v688 = vld [vmem:[#allocation3 + $0x10] sm:$0xff]
    %v689 = vld [vmem:[#allocation3 + $0x28] sm:$0xff]
    %v690 = vld [vmem:[#allocation3 + $0x30] sm:$0xff]
    %691 = vmatprep.subr.mxu0 0.0
    %692 = vmatpush1.msra.mxu0 %v671
    %693 = vmatprep.subr.mxu0 0.0
    %694 = vmatpush1.msra.mxu0 %v672
    %695 = vmatprep.subr.mxu0 0.0
    %696 = vmatpush1.msra.mxu0 %v673
    %697 = vmatprep.subr.mxu0 0.0
    %698 = vmatpush1.msra.mxu0 %v674
    %699 = vmatprep.subr.mxu0 0.0
    %700 = vmatpush1.msra.mxu0 %v675
    %701 = vmatprep.subr.mxu0 0.0
    %702 = vmatpush1.msra.mxu0 %v676
    %703 = vmatprep.subr.mxu0 0.0
    %704 = vmatpush1.msra.mxu0 %v677
    %705 = vmatprep.subr.mxu0 0.0
    %706 = vmatpush1.msra.mxu0 %v678
    %707 = vmatprep.subr.mxu0 0.0
    %708 = vmatpush1.msra.mxu0 %v679
    %709 = vmatprep.subr.mxu0 0.0
    %710 = vmatpush1.msra.mxu0 %v680
    %711 = vmatprep.subr.mxu0 0.0
    %712 = vmatpush1.msra.mxu0 %v681
    %713 = vmatprep.subr.mxu0 0.0
    %714 = vmatpush1.msra.mxu0 %v682
    %715 = vmatprep.subr.mxu0 0.0
    %716 = vmatpush1.msra.mxu0 %v683
    %717 = vmatprep.subr.mxu0 0.0
    %718 = vmatpush1.msra.mxu0 %v684
    %719 = vmatprep.subr.mxu0 0.0
    %720 = vmatpush1.msra.mxu0 %v685
    %721 = vmatprep.subr.mxu0 0.0
    %722 = vmatpush1.msra.mxu0 %v686
    %723 = vmatprep.subr.mxu0 0.0
    %724 = vmatpush1.msra.mxu0 0.0
    %725 = vmatprep.subr.mxu0 0.0
    %726 = vmatpush1.msra.mxu0 0.0
    %727 = vmatprep.subr.mxu0 0.0
    %728 = vmatpush1.msra.mxu0 0.0
    %729 = vmatprep.subr.mxu0 0.0
    %730 = vmatpush1.msra.mxu0 0.0
    %731 = vmatprep.subr.mxu0 0.0
    %732 = vmatpush1.msra.mxu0 0.0
    %733 = vmatprep.subr.mxu0 0.0
    %734 = vmatpush1.msra.mxu0 0.0
    %735 = vmatprep.subr.mxu0 0.0
    %736 = vmatpush1.msra.mxu0 0.0
    %737 = vmatprep.subr.mxu0 0.0
    %738 = vmatpush1.msra.mxu0 0.0
    %739 = vmatprep.subr.mxu0 0.0
    %740 = vmatpush1.msra.mxu0 0.0
    %741 = vmatprep.subr.mxu0 0.0
    %742 = vmatpush1.msra.mxu0 0.0
    %743 = vmatprep.subr.mxu0 0.0
    %744 = vmatpush1.msra.mxu0 0.0
    %745 = vmatprep.subr.mxu0 0.0
    %746 = vmatpush1.msra.mxu0 0.0
    %747 = vmatprep.subr.mxu0 0.0
    %748 = vmatpush1.msra.mxu0 0.0
    %749 = vmatprep.subr.mxu0 0.0
    %750 = vmatpush1.msra.mxu0 0.0
    %751 = vmatprep.subr.mxu0 0.0
    %752 = vmatpush1.msra.mxu0 0.0
    %753 = vmatprep.subr.mxu0 0.0
    %754 = vmatpush1.msra.mxu0 0.0
    %755 = vmatprep.mubr.f32.mxu0 0.0
    %756 = vmatmul.mubr.f32.gmra.mrb[0].mxu0 %v687
    %v757 = vpop.f32.mrb[0].mxu0
    %v758 = vadd.f32 0.0, %v757
    %v759 = vpop.f32.mrb[0].mxu0
    %760 = vmatprep.mubr.f32.mxu0 0.0
    %761 = vmatmul.mubr.f32.gmra.mrb[0].mxu0 %v688
    %v762 = vpop.f32.mrb[0].mxu0
    %v763 = vadd.f32 0.0, %v762
    %v764 = vpop.f32.mrb[0].mxu0
    %765 = vmatprep.mubr.f32.mxu0 0.0
    %766 = vmatmul.mubr.f32.gmra.mrb[0].mxu0 %v689
    %v767 = vpop.f32.mrb[0].mxu0
    %v768 = vadd.f32 0.0, %v767
    %v769 = vpop.f32.mrb[0].mxu0
    %770 = vmatprep.mubr.f32.mxu0 0.0
    %771 = vmatmul.mubr.f32.gmra.mrb[0].mxu0 %v690
    %v772 = vpop.f32.mrb[0].mxu0
    %v773 = vadd.f32 0.0, %v772
    %v774 = vpop.f32.mrb[0].mxu0
    %775 = vdwg.mxu0
    %776 = vmatprep.subr.mxu0 0.0
    %777 = vmatpush1.msra.mxu0 %v650
    %778 = vmatprep.subr.mxu0 0.0
    %779 = vmatpush1.msra.mxu0 %v651
    %780 = vmatprep.subr.mxu0 0.0
    %781 = vmatpush1.msra.mxu0 %v652
    %782 = vmatprep.subr.mxu0 0.0
    %783 = vmatpush1.msra.mxu0 %v653
    %784 = vmatprep.subr.mxu0 0.0
    %785 = vmatpush1.msra.mxu0 %v654
    %786 = vmatprep.subr.mxu0 0.0
    %787 = vmatpush1.msra.mxu0 %v655
    %788 = vmatprep.subr.mxu0 0.0
    %789 = vmatpush1.msra.mxu0 %v656
    %790 = vmatprep.subr.mxu0 0.0
    %791 = vmatpush1.msra.mxu0 %v657
    %792 = vmatprep.subr.mxu0 0.0
    %793 = vmatpush1.msra.mxu0 %v658
    %794 = vmatprep.subr.mxu0 0.0
    %795 = vmatpush1.msra.mxu0 %v659
    %796 = vmatprep.subr.mxu0 0.0
    %797 = vmatpush1.msra.mxu0 %v660
    %798 = vmatprep.subr.mxu0 0.0
    %799 = vmatpush1.msra.mxu0 %v661
    %800 = vmatprep.subr.mxu0 0.0
    %801 = vmatpush1.msra.mxu0 %v662
    %802 = vmatprep.subr.mxu0 0.0
    %803 = vmatpush1.msra.mxu0 %v663
    %804 = vmatprep.subr.mxu0 0.0
    %805 = vmatpush1.msra.mxu0 %v664
    %806 = vmatprep.subr.mxu0 0.0
    %807 = vmatpush1.msra.mxu0 %v665
    %808 = vmatprep.subr.mxu0 0.0
    %809 = vmatpush1.msra.mxu0 0.0
    %810 = vmatprep.subr.mxu0 0.0
    %811 = vmatpush1.msra.mxu0 0.0
    %812 = vmatprep.subr.mxu0 0.0
    %813 = vmatpush1.msra.mxu0 0.0
    %814 = vmatprep.subr.mxu0 0.0
    %815 = vmatpush1.msra.mxu0 0.0
    %816 = vmatprep.subr.mxu0 0.0
    %817 = vmatpush1.msra.mxu0 0.0
    %818 = vmatprep.subr.mxu0 0.0
    %819 = vmatpush1.msra.mxu0 0.0
    %820 = vmatprep.subr.mxu0 0.0
    %821 = vmatpush1.msra.mxu0 0.0
    %822 = vmatprep.subr.mxu0 0.0
    %823 = vmatpush1.msra.mxu0 0.0
    %824 = vmatprep.subr.mxu0 0.0
    %825 = vmatpush1.msra.mxu0 0.0
    %826 = vmatprep.subr.mxu0 0.0
    %827 = vmatpush1.msra.mxu0 0.0
    %828 = vmatprep.subr.mxu0 0.0
    %829 = vmatpush1.msra.mxu0 0.0
    %830 = vmatprep.subr.mxu0 0.0
    %831 = vmatpush1.msra.mxu0 0.0
    %832 = vmatprep.subr.mxu0 0.0
    %833 = vmatpush1.msra.mxu0 0.0
    %834 = vmatprep.subr.mxu0 0.0
    %835 = vmatpush1.msra.mxu0 0.0
    %836 = vmatprep.subr.mxu0 0.0
    %837 = vmatpush1.msra.mxu0 0.0
    %838 = vmatprep.subr.mxu0 0.0
    %839 = vmatpush1.msra.mxu0 0.0
    %840 = vmatprep.mubr.f32.mxu0 0.0
    %841 = vmatmul.mubr.f32.gmra.mrb[0].mxu0 %v666
    %v842 = vpop.f32.mrb[0].mxu0
    %v843 = vadd.f32 %v758, %v842
    %v844 = vpop.f32.mrb[0].mxu0
    %845 = vmatprep.mubr.f32.mxu0 0.0
    %846 = vmatmul.mubr.f32.gmra.mrb[0].mxu0 %v667
    %v847 = vpop.f32.mrb[0].mxu0
    %v848 = vadd.f32 %v763, %v847
    %v849 = vpop.f32.mrb[0].mxu0
    %850 = vmatprep.mubr.f32.mxu0 0.0
    %851 = vmatmul.mubr.f32.gmra.mrb[0].mxu0 %v668
    %v852 = vpop.f32.mrb[0].mxu0
    %v853 = vadd.f32 %v768, %v852
    %v854 = vpop.f32.mrb[0].mxu0
    %855 = vmatprep.mubr.f32.mxu0 0.0
    %856 = vmatmul.mubr.f32.gmra.mrb[0].mxu0 %v669
    %v857 = vpop.f32.mrb[0].mxu0
    %v858 = vadd.f32 %v773, %v857
    %v859 = vpop.f32.mrb[0].mxu0
    %860 = vdwg.mxu0
    %s861 = scalar_lea.vmem [#allocation9], 256
    %v862 = vld [vmem:[%s861] sm:$0xff]
    %v863 = vld [vmem:[%s861 + $0x8] sm:$0xff]
    %v864 = vld [vmem:[%s861 + $0x10] sm:$0xff]
    %v865 = vld [vmem:[%s861 + $0x18] sm:$0xff]
    %v866 = vld [vmem:[%s861 + $0x20] sm:$0xff]
    %v867 = vld [vmem:[%s861 + $0x28] sm:$0xff]
    %v868 = vld [vmem:[%s861 + $0x30] sm:$0xff]
    %v869 = vld [vmem:[%s861 + $0x38] sm:$0xff]
    %v870 = vld [vmem:[%s861 + $0x40] sm:$0xff]
    %v871 = vld [vmem:[%s861 + $0x48] sm:$0xff]
    %v872 = vld [vmem:[%s861 + $0x50] sm:$0xff]
    %v873 = vld [vmem:[%s861 + $0x58] sm:$0xff]
    %v874 = vld [vmem:[%s861 + $0x60] sm:$0xff]
    %v875 = vld [vmem:[%s861 + $0x68] sm:$0xff]
    %v876 = vld [vmem:[%s861 + $0x70] sm:$0xff]
    %v877 = vld [vmem:[%s861 + $0x78] sm:$0xff]
    %v878 = vld [vmem:[#allocation3 + $0x9] sm:$0xff]
    %v879 = vld [vmem:[#allocation3 + $0x11] sm:$0xff]
    %v880 = vld [vmem:[#allocation3 + $0x29] sm:$0xff]
    %v881 = vld [vmem:[#allocation3 + $0x31] sm:$0xff]
    %882 = vmatprep.subr.mxu0 0.0
    %883 = vmatpush1.msra.mxu0 %v862
    %884 = vmatprep.subr.mxu0 0.0
    %885 = vmatpush1.msra.mxu0 %v863
    %886 = vmatprep.subr.mxu0 0.0
    %887 = vmatpush1.msra.mxu0 %v864
    %888 = vmatprep.subr.mxu0 0.0
    %889 = vmatpush1.msra.mxu0 %v865
    %890 = vmatprep.subr.mxu0 0.0
    %891 = vmatpush1.msra.mxu0 %v866
    %892 = vmatprep.subr.mxu0 0.0
    %893 = vmatpush1.msra.mxu0 %v867
    %894 = vmatprep.subr.mxu0 0.0
    %895 = vmatpush1.msra.mxu0 %v868
    %896 = vmatprep.subr.mxu0 0.0
    %897 = vmatpush1.msra.mxu0 %v869
    %898 = vmatprep.subr.mxu0 0.0
    %899 = vmatpush1.msra.mxu0 %v870
    %900 = vmatprep.subr.mxu0 0.0
    %901 = vmatpush1.msra.mxu0 %v871
    %902 = vmatprep.subr.mxu0 0.0
    %903 = vmatpush1.msra.mxu0 %v872
    %904 = vmatprep.subr.mxu0 0.0
    %905 = vmatpush1.msra.mxu0 %v873
    %906 = vmatprep.subr.mxu0 0.0
    %907 = vmatpush1.msra.mxu0 %v874
    %908 = vmatprep.subr.mxu0 0.0
    %909 = vmatpush1.msra.mxu0 %v875
    %910 = vmatprep.subr.mxu0 0.0
    %911 = vmatpush1.msra.mxu0 %v876
    %912 = vmatprep.subr.mxu0 0.0
    %913 = vmatpush1.msra.mxu0 %v877
    %914 = vmatprep.subr.mxu0 0.0
    %915 = vmatpush1.msra.mxu0 0.0
    %916 = vmatprep.subr.mxu0 0.0
    %917 = vmatpush1.msra.mxu0 0.0
    %918 = vmatprep.subr.mxu0 0.0
    %919 = vmatpush1.msra.mxu0 0.0
    %920 = vmatprep.subr.mxu0 0.0
    %921 = vmatpush1.msra.mxu0 0.0
    %922 = vmatprep.subr.mxu0 0.0
    %923 = vmatpush1.msra.mxu0 0.0
    %924 = vmatprep.subr.mxu0 0.0
    %925 = vmatpush1.msra.mxu0 0.0
    %926 = vmatprep.subr.mxu0 0.0
    %927 = vmatpush1.msra.mxu0 0.0
    %928 = vmatprep.subr.mxu0 0.0
    %929 = vmatpush1.msra.mxu0 0.0
    %930 = vmatprep.subr.mxu0 0.0
    %931 = vmatpush1.msra.mxu0 0.0
    %932 = vmatprep.subr.mxu0 0.0
    %933 = vmatpush1.msra.mxu0 0.0
    %934 = vmatprep.subr.mxu0 0.0
    %935 = vmatpush1.msra.mxu0 0.0
    %936 = vmatprep.subr.mxu0 0.0
    %937 = vmatpush1.msra.mxu0 0.0
    %938 = vmatprep.subr.mxu0 0.0
    %939 = vmatpush1.msra.mxu0 0.0
    %940 = vmatprep.subr.mxu0 0.0
    %941 = vmatpush1.msra.mxu0 0.0
    %942 = vmatprep.subr.mxu0 0.0
    %943 = vmatpush1.msra.mxu0 0.0
    %944 = vmatprep.subr.mxu0 0.0
    %945 = vmatpush1.msra.mxu0 0.0
    %946 = vmatprep.mubr.f32.mxu0 0.0
    %947 = vmatmul.mubr.f32.gmra.mrb[0].mxu0 %v878
    %v948 = vpop.f32.mrb[0].mxu0
    %v949 = vadd.f32 0.0, %v948
    %v950 = vpop.f32.mrb[0].mxu0
    %951 = vmatprep.mubr.f32.mxu0 0.0
    %952 = vmatmul.mubr.f32.gmra.mrb[0].mxu0 %v879
    %v953 = vpop.f32.mrb[0].mxu0
    %v954 = vadd.f32 0.0, %v953
    %v955 = vpop.f32.mrb[0].mxu0
    %956 = vmatprep.mubr.f32.mxu0 0.0
    %957 = vmatmul.mubr.f32.gmra.mrb[0].mxu0 %v880
    %v958 = vpop.f32.mrb[0].mxu0
    %v959 = vadd.f32 0.0, %v958
    %v960 = vpop.f32.mrb[0].mxu0
    %961 = vmatprep.mubr.f32.mxu0 0.0
    %962 = vmatmul.mubr.f32.gmra.mrb[0].mxu0 %v881
    %v963 = vpop.f32.mrb[0].mxu0
    %v964 = vadd.f32 0.0, %v963
    %v965 = vpop.f32.mrb[0].mxu0
    %966 = vdwg.mxu0
    %v967 = vadd.f32 %v843, %v949
    %v968 = vadd.f32 %v848, %v954
    %v969 = vadd.f32 %v853, %v959
    %v970 = vadd.f32 %v858, %v964
    %v971 = vadd.f32 %v967, %v968
    %v972 = vadd.f32 %v971, %v969
    %v973 = vadd.f32 %v972, %v970
    %v974 = vrot.slane %v973, 4
    %v975 = vadd.f32 %v973, %v974
    %v976 = vrot.slane %v975, 2
    %v977 = vadd.f32 %v975, %v976
    %v978 = vrot.slane %v977, 1
    %v979 = vadd.f32 %v977, %v978
    %v980 = vmul.f32 %v967, %v967
    %v981 = vmul.f32 %v968, %v968
    %v982 = vmul.f32 %v969, %v969
    %v983 = vmul.f32 %v970, %v970
    %v984 = vadd.f32 %v980, %v981
    %v985 = vadd.f32 %v984, %v982
    %v986 = vadd.f32 %v985, %v983
    %v987 = vrot.slane %v986, 4
    %v988 = vadd.f32 %v986, %v987
    %v989 = vrot.slane %v988, 2
    %v990 = vadd.f32 %v988, %v989
    %v991 = vrot.slane %v990, 1
    %v992 = vadd.f32 %v990, %v991
    %993 = vmatprep.subr.mxu0 0.0
    %994 = vmatpush1.msra.mxu0 %v104
    %995 = vmatprep.subr.mxu0 0.0
    %996 = vmatpush1.msra.mxu0 %v105
    %997 = vmatprep.subr.mxu0 0.0
    %998 = vmatpush1.msra.mxu0 %v106
    %999 = vmatprep.subr.mxu0 0.0
    %1000 = vmatpush1.msra.mxu0 %v107
    %1001 = vmatprep.subr.mxu0 0.0
    %1002 = vmatpush1.msra.mxu0 %v108
    %1003 = vmatprep.subr.mxu0 0.0
    %1004 = vmatpush1.msra.mxu0 %v109
    %1005 = vmatprep.subr.mxu0 0.0
    %1006 = vmatpush1.msra.mxu0 %v110
    %1007 = vmatprep.subr.mxu0 0.0
    %1008 = vmatpush1.msra.mxu0 %v111
    %1009 = vmatprep.subr.mxu0 0.0
    %1010 = vmatpush1.msra.mxu0 %v112
    %1011 = vmatprep.subr.mxu0 0.0
    %1012 = vmatpush1.msra.mxu0 %v113
    %1013 = vmatprep.subr.mxu0 0.0
    %1014 = vmatpush1.msra.mxu0 %v114
    %1015 = vmatprep.subr.mxu0 0.0
    %1016 = vmatpush1.msra.mxu0 %v115
    %1017 = vmatprep.subr.mxu0 0.0
    %1018 = vmatpush1.msra.mxu0 %v116
    %1019 = vmatprep.subr.mxu0 0.0
    %1020 = vmatpush1.msra.mxu0 %v117
    %1021 = vmatprep.subr.mxu0 0.0
    %1022 = vmatpush1.msra.mxu0 %v118
    %1023 = vmatprep.subr.mxu0 0.0
    %1024 = vmatpush1.msra.mxu0 %v119
    %1025 = vmatprep.subr.mxu0 0.0
    %1026 = vmatpush1.msra.mxu0 0.0
    %1027 = vmatprep.subr.mxu0 0.0
    %1028 = vmatpush1.msra.mxu0 0.0
    %1029 = vmatprep.subr.mxu0 0.0
    %1030 = vmatpush1.msra.mxu0 0.0
    %1031 = vmatprep.subr.mxu0 0.0
    %1032 = vmatpush1.msra.mxu0 0.0
    %1033 = vmatprep.subr.mxu0 0.0
    %1034 = vmatpush1.msra.mxu0 0.0
    %1035 = vmatprep.subr.mxu0 0.0
    %1036 = vmatpush1.msra.mxu0 0.0
    %1037 = vmatprep.subr.mxu0 0.0
    %1038 = vmatpush1.msra.mxu0 0.0
    %1039 = vmatprep.subr.mxu0 0.0
    %1040 = vmatpush1.msra.mxu0 0.0
    %1041 = vmatprep.subr.mxu0 0.0
    %1042 = vmatpush1.msra.mxu0 0.0
    %1043 = vmatprep.subr.mxu0 0.0
    %1044 = vmatpush1.msra.mxu0 0.0
    %1045 = vmatprep.subr.mxu0 0.0
    %1046 = vmatpush1.msra.mxu0 0.0
    %1047 = vmatprep.subr.mxu0 0.0
    %1048 = vmatpush1.msra.mxu0 0.0
    %1049 = vmatprep.subr.mxu0 0.0
    %1050 = vmatpush1.msra.mxu0 0.0
    %1051 = vmatprep.subr.mxu0 0.0
    %1052 = vmatpush1.msra.mxu0 0.0
    %1053 = vmatprep.subr.mxu0 0.0
    %1054 = vmatpush1.msra.mxu0 0.0
    %1055 = vmatprep.subr.mxu0 0.0
    %1056 = vmatpush1.msra.mxu0 0.0
    %1057 = vmatprep.mubr.f32.mxu0 0.0
    %1058 = vmatmul.mubr.f32.gmra.mrb[0].mxu0 %v979
    %v1059 = vpop.f32.mrb[0].mxu0
    %v1060 = vadd.f32 0.0, %v1059
    %v1061 = vpop.f32.mrb[0].mxu0
    %1062 = vdwg.mxu0
    %v1063 = vmul.f32 %v1060, 0.001953125
    %1064 = vmatprep.subr.mxu0 0.0
    %1065 = vmatpush1.msra.mxu0 %v104
    %1066 = vmatprep.subr.mxu0 0.0
    %1067 = vmatpush1.msra.mxu0 %v105
    %1068 = vmatprep.subr.mxu0 0.0
    %1069 = vmatpush1.msra.mxu0 %v106
    %1070 = vmatprep.subr.mxu0 0.0
    %1071 = vmatpush1.msra.mxu0 %v107
    %1072 = vmatprep.subr.mxu0 0.0
    %1073 = vmatpush1.msra.mxu0 %v108
    %1074 = vmatprep.subr.mxu0 0.0
    %1075 = vmatpush1.msra.mxu0 %v109
    %1076 = vmatprep.subr.mxu0 0.0
    %1077 = vmatpush1.msra.mxu0 %v110
    %1078 = vmatprep.subr.mxu0 0.0
    %1079 = vmatpush1.msra.mxu0 %v111
    %1080 = vmatprep.subr.mxu0 0.0
    %1081 = vmatpush1.msra.mxu0 %v112
    %1082 = vmatprep.subr.mxu0 0.0
    %1083 = vmatpush1.msra.mxu0 %v113
    %1084 = vmatprep.subr.mxu0 0.0
    %1085 = vmatpush1.msra.mxu0 %v114
    %1086 = vmatprep.subr.mxu0 0.0
    %1087 = vmatpush1.msra.mxu0 %v115
    %1088 = vmatprep.subr.mxu0 0.0
    %1089 = vmatpush1.msra.mxu0 %v116
    %1090 = vmatprep.subr.mxu0 0.0
    %1091 = vmatpush1.msra.mxu0 %v117
    %1092 = vmatprep.subr.mxu0 0.0
    %1093 = vmatpush1.msra.mxu0 %v118
    %1094 = vmatprep.subr.mxu0 0.0
    %1095 = vmatpush1.msra.mxu0 %v119
    %1096 = vmatprep.subr.mxu0 0.0
    %1097 = vmatpush1.msra.mxu0 0.0
    %1098 = vmatprep.subr.mxu0 0.0
    %1099 = vmatpush1.msra.mxu0 0.0
    %1100 = vmatprep.subr.mxu0 0.0
    %1101 = vmatpush1.msra.mxu0 0.0
    %1102 = vmatprep.subr.mxu0 0.0
    %1103 = vmatpush1.msra.mxu0 0.0
    %1104 = vmatprep.subr.mxu0 0.0
    %1105 = vmatpush1.msra.mxu0 0.0
    %1106 = vmatprep.subr.mxu0 0.0
    %1107 = vmatpush1.msra.mxu0 0.0
    %1108 = vmatprep.subr.mxu0 0.0
    %1109 = vmatpush1.msra.mxu0 0.0
    %1110 = vmatprep.subr.mxu0 0.0
    %1111 = vmatpush1.msra.mxu0 0.0
    %1112 = vmatprep.subr.mxu0 0.0
    %1113 = vmatpush1.msra.mxu0 0.0
    %1114 = vmatprep.subr.mxu0 0.0
    %1115 = vmatpush1.msra.mxu0 0.0
    %1116 = vmatprep.subr.mxu0 0.0
    %1117 = vmatpush1.msra.mxu0 0.0
    %1118 = vmatprep.subr.mxu0 0.0
    %1119 = vmatpush1.msra.mxu0 0.0
    %1120 = vmatprep.subr.mxu0 0.0
    %1121 = vmatpush1.msra.mxu0 0.0
    %1122 = vmatprep.subr.mxu0 0.0
    %1123 = vmatpush1.msra.mxu0 0.0
    %1124 = vmatprep.subr.mxu0 0.0
    %1125 = vmatpush1.msra.mxu0 0.0
    %1126 = vmatprep.subr.mxu0 0.0
    %1127 = vmatpush1.msra.mxu0 0.0
    %1128 = vmatprep.mubr.f32.mxu0 0.0
    %1129 = vmatmul.mubr.f32.gmra.mrb[0].mxu0 %v992
    %v1130 = vpop.f32.mrb[0].mxu0
    %v1131 = vadd.f32 0.0, %v1130
    %v1132 = vpop.f32.mrb[0].mxu0
    %1133 = vdwg.mxu0
    %v1134 = vmul.f32 %v1131, 0.001953125
    %v1135 = vmul.f32 %v1063, %v1063
    %v1136 = vsub.f32 %v1134, %v1135
    %v1137 = vld [vmem:[%s3 + $0x1] sm:$0x1]
    %v1138 = vadd.f32 %v1136, 1e-05
    %v1139 = vrsqrt.pop %v1138
    %v1140 = vmul.f32 %v1137, %v1139
    %v1141 = vld [vmem:[%s4 + $0x1] sm:$0x1]
    %v1142 = vmul.f32 %v1063, %v1140
    %v1143 = vsub.f32 %v1141, %v1142
    %v1144 = vlaneseq
    %v1145 = vshrl.u32 %v1144, 7
    %v1146 = vsub.s32 0, %v1145
    %v1147 = vrot.slane %v1140, %v1146
    %v1148 = vmul.f32 %v967, %v1147
    %v1149 = vmul.f32 %v968, %v1147
    %v1150 = vmul.f32 %v969, %v1147
    %v1151 = vmul.f32 %v970, %v1147
    %v1152 = vlaneseq
    %v1153 = vshrl.u32 %v1152, 7
    %v1154 = vsub.s32 0, %v1153
    %v1155 = vrot.slane %v1143, %v1154
    %v1156 = vadd.f32 %v1148, %v1155
    %v1157 = vadd.f32 %v1149, %v1155
    %v1158 = vadd.f32 %v1150, %v1155
    %v1159 = vadd.f32 %v1151, %v1155
    %v1160 = vmax.f32 %v1156, 0.0
    %v1161 = vmax.f32 %v1157, 0.0
    %v1162 = vmax.f32 %v1158, 0.0
    %v1163 = vmax.f32 %v1159, 0.0
    %1164 = vst [vmem:[#allocation3 + $0x8] sm:$0xff] %v1160
    %1165 = vst [vmem:[#allocation3 + $0x10] sm:$0xff] %v1161
    %1166 = vst [vmem:[#allocation3 + $0x28] sm:$0xff] %v1162
    %1167 = vst [vmem:[#allocation3 + $0x30] sm:$0xff] %v1163
    %s1168 = scalar_lea.vmem [#allocation9], 384
    %v1169 = vld [vmem:[%s1168] sm:$0xff]
    %v1170 = vld [vmem:[%s1168 + $0x8] sm:$0xff]
    %v1171 = vld [vmem:[%s1168 + $0x10] sm:$0xff]
    %v1172 = vld [vmem:[%s1168 + $0x18] sm:$0xff]
    %v1173 = vld [vmem:[%s1168 + $0x20] sm:$0xff]
    %v1174 = vld [vmem:[%s1168 + $0x28] sm:$0xff]
    %v1175 = vld [vmem:[%s1168 + $0x30] sm:$0xff]
    %v1176 = vld [vmem:[%s1168 + $0x38] sm:$0xff]
    %v1177 = vld [vmem:[%s1168 + $0x40] sm:$0xff]
    %v1178 = vld [vmem:[%s1168 + $0x48] sm:$0xff]
    %v1179 = vld [vmem:[%s1168 + $0x50] sm:$0xff]
    %v1180 = vld [vmem:[%s1168 + $0x58] sm:$0xff]
    %v1181 = vld [vmem:[%s1168 + $0x60] sm:$0xff]
    %v1182 = vld [vmem:[%s1168 + $0x68] sm:$0xff]
    %v1183 = vld [vmem:[%s1168 + $0x70] sm:$0xff]
    %v1184 = vld [vmem:[%s1168 + $0x78] sm:$0xff]
    %v1185 = vld [vmem:[#allocation3 + $0x7] sm:$0xff]
    %v1186 = vld [vmem:[#allocation3 + $0xf] sm:$0xff]
    %v1187 = vld [vmem:[#allocation3 + $0x27] sm:$0xff]
    %v1188 = vld [vmem:[#allocation3 + $0x2f] sm:$0xff]
    %s1189 = scalar_lea.vmem [#allocation9], 512
    %v1190 = vld [vmem:[%s1189] sm:$0xff]
    %v1191 = vld [vmem:[%s1189 + $0x8] sm:$0xff]
    %v1192 = vld [vmem:[%s1189 + $0x10] sm:$0xff]
    %v1193 = vld [vmem:[%s1189 + $0x18] sm:$0xff]
    %v1194 = vld [vmem:[%s1189 + $0x20] sm:$0xff]
    %v1195 = vld [vmem:[%s1189 + $0x28] sm:$0xff]
    %v1196 = vld [vmem:[%s1189 + $0x30] sm:$0xff]
    %v1197 = vld [vmem:[%s1189 + $0x38] sm:$0xff]
    %v1198 = vld [vmem:[%s1189 + $0x40] sm:$0xff]
    %v1199 = vld [vmem:[%s1189 + $0x48] sm:$0xff]
    %v1200 = vld [vmem:[%s1189 + $0x50] sm:$0xff]
    %v1201 = vld [vmem:[%s1189 + $0x58] sm:$0xff]
    %v1202 = vld [vmem:[%s1189 + $0x60] sm:$0xff]
    %v1203 = vld [vmem:[%s1189 + $0x68] sm:$0xff]
    %v1204 = vld [vmem:[%s1189 + $0x70] sm:$0xff]
    %v1205 = vld [vmem:[%s1189 + $0x78] sm:$0xff]
    %v1206 = vld [vmem:[#allocation3 + $0x8] sm:$0xff]
    %v1207 = vld [vmem:[#allocation3 + $0x10] sm:$0xff]
    %v1208 = vld [vmem:[#allocation3 + $0x28] sm:$0xff]
    %v1209 = vld [vmem:[#allocation3 + $0x30] sm:$0xff]
    %1210 = vmatprep.subr.mxu0 0.0
    %1211 = vmatpush1.msra.mxu0 %v1190
    %1212 = vmatprep.subr.mxu0 0.0
    %1213 = vmatpush1.msra.mxu0 %v1191
    %1214 = vmatprep.subr.mxu0 0.0
    %1215 = vmatpush1.msra.mxu0 %v1192
    %1216 = vmatprep.subr.mxu0 0.0
    %1217 = vmatpush1.msra.mxu0 %v1193
    %1218 = vmatprep.subr.mxu0 0.0
    %1219 = vmatpush1.msra.mxu0 %v1194
    %1220 = vmatprep.subr.mxu0 0.0
    %1221 = vmatpush1.msra.mxu0 %v1195
    %1222 = vmatprep.subr.mxu0 0.0
    %1223 = vmatpush1.msra.mxu0 %v1196
    %1224 = vmatprep.subr.mxu0 0.0
    %1225 = vmatpush1.msra.mxu0 %v1197
    %1226 = vmatprep.subr.mxu0 0.0
    %1227 = vmatpush1.msra.mxu0 %v1198
    %1228 = vmatprep.subr.mxu0 0.0
    %1229 = vmatpush1.msra.mxu0 %v1199
    %1230 = vmatprep.subr.mxu0 0.0
    %1231 = vmatpush1.msra.mxu0 %v1200
    %1232 = vmatprep.subr.mxu0 0.0
    %1233 = vmatpush1.msra.mxu0 %v1201
    %1234 = vmatprep.subr.mxu0 0.0
    %1235 = vmatpush1.msra.mxu0 %v1202
    %1236 = vmatprep.subr.mxu0 0.0
    %1237 = vmatpush1.msra.mxu0 %v1203
    %1238 = vmatprep.subr.mxu0 0.0
    %1239 = vmatpush1.msra.mxu0 %v1204
    %1240 = vmatprep.subr.mxu0 0.0
    %1241 = vmatpush1.msra.mxu0 %v1205
    %1242 = vmatprep.subr.mxu0 0.0
    %1243 = vmatpush1.msra.mxu0 0.0
    %1244 = vmatprep.subr.mxu0 0.0
    %1245 = vmatpush1.msra.mxu0 0.0
    %1246 = vmatprep.subr.mxu0 0.0
    %1247 = vmatpush1.msra.mxu0 0.0
    %1248 = vmatprep.subr.mxu0 0.0
    %1249 = vmatpush1.msra.mxu0 0.0
    %1250 = vmatprep.subr.mxu0 0.0
    %1251 = vmatpush1.msra.mxu0 0.0
    %1252 = vmatprep.subr.mxu0 0.0
    %1253 = vmatpush1.msra.mxu0 0.0
    %1254 = vmatprep.subr.mxu0 0.0
    %1255 = vmatpush1.msra.mxu0 0.0
    %1256 = vmatprep.subr.mxu0 0.0
    %1257 = vmatpush1.msra.mxu0 0.0
    %1258 = vmatprep.subr.mxu0 0.0
    %1259 = vmatpush1.msra.mxu0 0.0
    %1260 = vmatprep.subr.mxu0 0.0
    %1261 = vmatpush1.msra.mxu0 0.0
    %1262 = vmatprep.subr.mxu0 0.0
    %1263 = vmatpush1.msra.mxu0 0.0
    %1264 = vmatprep.subr.mxu0 0.0
    %1265 = vmatpush1.msra.mxu0 0.0
    %1266 = vmatprep.subr.mxu0 0.0
    %1267 = vmatpush1.msra.mxu0 0.0
    %1268 = vmatprep.subr.mxu0 0.0
    %1269 = vmatpush1.msra.mxu0 0.0
    %1270 = vmatprep.subr.mxu0 0.0
    %1271 = vmatpush1.msra.mxu0 0.0
    %1272 = vmatprep.subr.mxu0 0.0
    %1273 = vmatpush1.msra.mxu0 0.0
    %1274 = vmatprep.mubr.f32.mxu0 0.0
    %1275 = vmatmul.mubr.f32.gmra.mrb[0].mxu0 %v1206
    %v1276 = vpop.f32.mrb[0].mxu0
    %v1277 = vadd.f32 0.0, %v1276
    %v1278 = vpop.f32.mrb[0].mxu0
    %1279 = vmatprep.mubr.f32.mxu0 0.0
    %1280 = vmatmul.mubr.f32.gmra.mrb[0].mxu0 %v1207
    %v1281 = vpop.f32.mrb[0].mxu0
    %v1282 = vadd.f32 0.0, %v1281
    %v1283 = vpop.f32.mrb[0].mxu0
    %1284 = vmatprep.mubr.f32.mxu0 0.0
    %1285 = vmatmul.mubr.f32.gmra.mrb[0].mxu0 %v1208
    %v1286 = vpop.f32.mrb[0].mxu0
    %v1287 = vadd.f32 0.0, %v1286
    %v1288 = vpop.f32.mrb[0].mxu0
    %1289 = vmatprep.mubr.f32.mxu0 0.0
    %1290 = vmatmul.mubr.f32.gmra.mrb[0].mxu0 %v1209
    %v1291 = vpop.f32.mrb[0].mxu0
    %v1292 = vadd.f32 0.0, %v1291
    %v1293 = vpop.f32.mrb[0].mxu0
    %1294 = vdwg.mxu0
    %1295 = vmatprep.subr.mxu0 0.0
    %1296 = vmatpush1.msra.mxu0 %v1169
    %1297 = vmatprep.subr.mxu0 0.0
    %1298 = vmatpush1.msra.mxu0 %v1170
    %1299 = vmatprep.subr.mxu0 0.0
    %1300 = vmatpush1.msra.mxu0 %v1171
    %1301 = vmatprep.subr.mxu0 0.0
    %1302 = vmatpush1.msra.mxu0 %v1172
    %1303 = vmatprep.subr.mxu0 0.0
    %1304 = vmatpush1.msra.mxu0 %v1173
    %1305 = vmatprep.subr.mxu0 0.0
    %1306 = vmatpush1.msra.mxu0 %v1174
    %1307 = vmatprep.subr.mxu0 0.0
    %1308 = vmatpush1.msra.mxu0 %v1175
    %1309 = vmatprep.subr.mxu0 0.0
    %1310 = vmatpush1.msra.mxu0 %v1176
    %1311 = vmatprep.subr.mxu0 0.0
    %1312 = vmatpush1.msra.mxu0 %v1177
    %1313 = vmatprep.subr.mxu0 0.0
    %1314 = vmatpush1.msra.mxu0 %v1178
    %1315 = vmatprep.subr.mxu0 0.0
    %1316 = vmatpush1.msra.mxu0 %v1179
    %1317 = vmatprep.subr.mxu0 0.0
    %1318 = vmatpush1.msra.mxu0 %v1180
    %1319 = vmatprep.subr.mxu0 0.0
    %1320 = vmatpush1.msra.mxu0 %v1181
    %1321 = vmatprep.subr.mxu0 0.0
    %1322 = vmatpush1.msra.mxu0 %v1182
    %1323 = vmatprep.subr.mxu0 0.0
    %1324 = vmatpush1.msra.mxu0 %v1183
    %1325 = vmatprep.subr.mxu0 0.0
    %1326 = vmatpush1.msra.mxu0 %v1184
    %1327 = vmatprep.subr.mxu0 0.0
    %1328 = vmatpush1.msra.mxu0 0.0
    %1329 = vmatprep.subr.mxu0 0.0
    %1330 = vmatpush1.msra.mxu0 0.0
    %1331 = vmatprep.subr.mxu0 0.0
    %1332 = vmatpush1.msra.mxu0 0.0
    %1333 = vmatprep.subr.mxu0 0.0
    %1334 = vmatpush1.msra.mxu0 0.0
    %1335 = vmatprep.subr.mxu0 0.0
    %1336 = vmatpush1.msra.mxu0 0.0
    %1337 = vmatprep.subr.mxu0 0.0
    %1338 = vmatpush1.msra.mxu0 0.0
    %1339 = vmatprep.subr.mxu0 0.0
    %1340 = vmatpush1.msra.mxu0 0.0
    %1341 = vmatprep.subr.mxu0 0.0
    %1342 = vmatpush1.msra.mxu0 0.0
    %1343 = vmatprep.subr.mxu0 0.0
    %1344 = vmatpush1.msra.mxu0 0.0
    %1345 = vmatprep.subr.mxu0 0.0
    %1346 = vmatpush1.msra.mxu0 0.0
    %1347 = vmatprep.subr.mxu0 0.0
    %1348 = vmatpush1.msra.mxu0 0.0
    %1349 = vmatprep.subr.mxu0 0.0
    %1350 = vmatpush1.msra.mxu0 0.0
    %1351 = vmatprep.subr.mxu0 0.0
    %1352 = vmatpush1.msra.mxu0 0.0
    %1353 = vmatprep.subr.mxu0 0.0
    %1354 = vmatpush1.msra.mxu0 0.0
    %1355 = vmatprep.subr.mxu0 0.0
    %1356 = vmatpush1.msra.mxu0 0.0
    %1357 = vmatprep.subr.mxu0 0.0
    %1358 = vmatpush1.msra.mxu0 0.0
    %1359 = vmatprep.mubr.f32.mxu0 0.0
    %1360 = vmatmul.mubr.f32.gmra.mrb[0].mxu0 %v1185
    %v1361 = vpop.f32.mrb[0].mxu0
    %v1362 = vadd.f32 %v1277, %v1361
    %v1363 = vpop.f32.mrb[0].mxu0
    %1364 = vmatprep.mubr.f32.mxu0 0.0
    %1365 = vmatmul.mubr.f32.gmra.mrb[0].mxu0 %v1186
    %v1366 = vpop.f32.mrb[0].mxu0
    %v1367 = vadd.f32 %v1282, %v1366
    %v1368 = vpop.f32.mrb[0].mxu0
    %1369 = vmatprep.mubr.f32.mxu0 0.0
    %1370 = vmatmul.mubr.f32.gmra.mrb[0].mxu0 %v1187
    %v1371 = vpop.f32.mrb[0].mxu0
    %v1372 = vadd.f32 %v1287, %v1371
    %v1373 = vpop.f32.mrb[0].mxu0
    %1374 = vmatprep.mubr.f32.mxu0 0.0
    %1375 = vmatmul.mubr.f32.gmra.mrb[0].mxu0 %v1188
    %v1376 = vpop.f32.mrb[0].mxu0
    %v1377 = vadd.f32 %v1292, %v1376
    %v1378 = vpop.f32.mrb[0].mxu0
    %1379 = vdwg.mxu0
    %s1380 = scalar_lea.vmem [#allocation9], 640
    %v1381 = vld [vmem:[%s1380] sm:$0xff]
    %v1382 = vld [vmem:[%s1380 + $0x8] sm:$0xff]
    %v1383 = vld [vmem:[%s1380 + $0x10] sm:$0xff]
    %v1384 = vld [vmem:[%s1380 + $0x18] sm:$0xff]
    %v1385 = vld [vmem:[%s1380 + $0x20] sm:$0xff]
    %v1386 = vld [vmem:[%s1380 + $0x28] sm:$0xff]
    %v1387 = vld [vmem:[%s1380 + $0x30] sm:$0xff]
    %v1388 = vld [vmem:[%s1380 + $0x38] sm:$0xff]
    %v1389 = vld [vmem:[%s1380 + $0x40] sm:$0xff]
    %v1390 = vld [vmem:[%s1380 + $0x48] sm:$0xff]
    %v1391 = vld [vmem:[%s1380 + $0x50] sm:$0xff]
    %v1392 = vld [vmem:[%s1380 + $0x58] sm:$0xff]
    %v1393 = vld [vmem:[%s1380 + $0x60] sm:$0xff]
    %v1394 = vld [vmem:[%s1380 + $0x68] sm:$0xff]
    %v1395 = vld [vmem:[%s1380 + $0x70] sm:$0xff]
    %v1396 = vld [vmem:[%s1380 + $0x78] sm:$0xff]
    %v1397 = vld [vmem:[#allocation3 + $0x9] sm:$0xff]
    %v1398 = vld [vmem:[#allocation3 + $0x11] sm:$0xff]
    %v1399 = vld [vmem:[#allocation3 + $0x29] sm:$0xff]
    %v1400 = vld [vmem:[#allocation3 + $0x31] sm:$0xff]
    %1401 = vmatprep.subr.mxu0 0.0
    %1402 = vmatpush1.msra.mxu0 %v1381
    %1403 = vmatprep.subr.mxu0 0.0
    %1404 = vmatpush1.msra.mxu0 %v1382
    %1405 = vmatprep.subr.mxu0 0.0
    %1406 = vmatpush1.msra.mxu0 %v1383
    %1407 = vmatprep.subr.mxu0 0.0
    %1408 = vmatpush1.msra.mxu0 %v1384
    %1409 = vmatprep.subr.mxu0 0.0
    %1410 = vmatpush1.msra.mxu0 %v1385
    %1411 = vmatprep.subr.mxu0 0.0
    %1412 = vmatpush1.msra.mxu0 %v1386
    %1413 = vmatprep.subr.mxu0 0.0
    %1414 = vmatpush1.msra.mxu0 %v1387
    %1415 = vmatprep.subr.mxu0 0.0
    %1416 = vmatpush1.msra.mxu0 %v1388
    %1417 = vmatprep.subr.mxu0 0.0
    %1418 = vmatpush1.msra.mxu0 %v1389
    %1419 = vmatprep.subr.mxu0 0.0
    %1420 = vmatpush1.msra.mxu0 %v1390
    %1421 = vmatprep.subr.mxu0 0.0
    %1422 = vmatpush1.msra.mxu0 %v1391
    %1423 = vmatprep.subr.mxu0 0.0
    %1424 = vmatpush1.msra.mxu0 %v1392
    %1425 = vmatprep.subr.mxu0 0.0
    %1426 = vmatpush1.msra.mxu0 %v1393
    %1427 = vmatprep.subr.mxu0 0.0
    %1428 = vmatpush1.msra.mxu0 %v1394
    %1429 = vmatprep.subr.mxu0 0.0
    %1430 = vmatpush1.msra.mxu0 %v1395
    %1431 = vmatprep.subr.mxu0 0.0
    %1432 = vmatpush1.msra.mxu0 %v1396
    %1433 = vmatprep.subr.mxu0 0.0
    %1434 = vmatpush1.msra.mxu0 0.0
    %1435 = vmatprep.subr.mxu0 0.0
    %1436 = vmatpush1.msra.mxu0 0.0
    %1437 = vmatprep.subr.mxu0 0.0
    %1438 = vmatpush1.msra.mxu0 0.0
    %1439 = vmatprep.subr.mxu0 0.0
    %1440 = vmatpush1.msra.mxu0 0.0
    %1441 = vmatprep.subr.mxu0 0.0
    %1442 = vmatpush1.msra.mxu0 0.0
    %1443 = vmatprep.subr.mxu0 0.0
    %1444 = vmatpush1.msra.mxu0 0.0
    %1445 = vmatprep.subr.mxu0 0.0
    %1446 = vmatpush1.msra.mxu0 0.0
    %1447 = vmatprep.subr.mxu0 0.0
    %1448 = vmatpush1.msra.mxu0 0.0
    %1449 = vmatprep.subr.mxu0 0.0
    %1450 = vmatpush1.msra.mxu0 0.0
    %1451 = vmatprep.subr.mxu0 0.0
    %1452 = vmatpush1.msra.mxu0 0.0
    %1453 = vmatprep.subr.mxu0 0.0
    %1454 = vmatpush1.msra.mxu0 0.0
    %1455 = vmatprep.subr.mxu0 0.0
    %1456 = vmatpush1.msra.mxu0 0.0
    %1457 = vmatprep.subr.mxu0 0.0
    %1458 = vmatpush1.msra.mxu0 0.0
    %1459 = vmatprep.subr.mxu0 0.0
    %1460 = vmatpush1.msra.mxu0 0.0
    %1461 = vmatprep.subr.mxu0 0.0
    %1462 = vmatpush1.msra.mxu0 0.0
    %1463 = vmatprep.subr.mxu0 0.0
    %1464 = vmatpush1.msra.mxu0 0.0
    %1465 = vmatprep.mubr.f32.mxu0 0.0
    %1466 = vmatmul.mubr.f32.gmra.mrb[0].mxu0 %v1397
    %v1467 = vpop.f32.mrb[0].mxu0
    %v1468 = vadd.f32 0.0, %v1467
    %v1469 = vpop.f32.mrb[0].mxu0
    %1470 = vmatprep.mubr.f32.mxu0 0.0
    %1471 = vmatmul.mubr.f32.gmra.mrb[0].mxu0 %v1398
    %v1472 = vpop.f32.mrb[0].mxu0
    %v1473 = vadd.f32 0.0, %v1472
    %v1474 = vpop.f32.mrb[0].mxu0
    %1475 = vmatprep.mubr.f32.mxu0 0.0
    %1476 = vmatmul.mubr.f32.gmra.mrb[0].mxu0 %v1399
    %v1477 = vpop.f32.mrb[0].mxu0
    %v1478 = vadd.f32 0.0, %v1477
    %v1479 = vpop.f32.mrb[0].mxu0
    %1480 = vmatprep.mubr.f32.mxu0 0.0
    %1481 = vmatmul.mubr.f32.gmra.mrb[0].mxu0 %v1400
    %v1482 = vpop.f32.mrb[0].mxu0
    %v1483 = vadd.f32 0.0, %v1482
    %v1484 = vpop.f32.mrb[0].mxu0
    %1485 = vdwg.mxu0
    %v1486 = vadd.f32 %v1362, %v1468
    %v1487 = vadd.f32 %v1367, %v1473
    %v1488 = vadd.f32 %v1372, %v1478
    %v1489 = vadd.f32 %v1377, %v1483
    %v1490 = vadd.f32 %v1486, %v1487
    %v1491 = vadd.f32 %v1490, %v1488
    %v1492 = vadd.f32 %v1491, %v1489
    %v1493 = vrot.slane %v1492, 4
    %v1494 = vadd.f32 %v1492, %v1493
    %v1495 = vrot.slane %v1494, 2
    %v1496 = vadd.f32 %v1494, %v1495
    %v1497 = vrot.slane %v1496, 1
    %v1498 = vadd.f32 %v1496, %v1497
    %v1499 = vmul.f32 %v1486, %v1486
    %v1500 = vmul.f32 %v1487, %v1487
    %v1501 = vmul.f32 %v1488, %v1488
    %v1502 = vmul.f32 %v1489, %v1489
    %v1503 = vadd.f32 %v1499, %v1500
    %v1504 = vadd.f32 %v1503, %v1501
    %v1505 = vadd.f32 %v1504, %v1502
    %v1506 = vrot.slane %v1505, 4
    %v1507 = vadd.f32 %v1505, %v1506
    %v1508 = vrot.slane %v1507, 2
    %v1509 = vadd.f32 %v1507, %v1508
    %v1510 = vrot.slane %v1509, 1
    %v1511 = vadd.f32 %v1509, %v1510
    %1512 = vmatprep.subr.mxu0 0.0
    %1513 = vmatpush1.msra.mxu0 %v104
    %1514 = vmatprep.subr.mxu0 0.0
    %1515 = vmatpush1.msra.mxu0 %v105
    %1516 = vmatprep.subr.mxu0 0.0
    %1517 = vmatpush1.msra.mxu0 %v106
    %1518 = vmatprep.subr.mxu0 0.0
    %1519 = vmatpush1.msra.mxu0 %v107
    %1520 = vmatprep.subr.mxu0 0.0
    %1521 = vmatpush1.msra.mxu0 %v108
    %1522 = vmatprep.subr.mxu0 0.0
    %1523 = vmatpush1.msra.mxu0 %v109
    %1524 = vmatprep.subr.mxu0 0.0
    %1525 = vmatpush1.msra.mxu0 %v110
    %1526 = vmatprep.subr.mxu0 0.0
    %1527 = vmatpush1.msra.mxu0 %v111
    %1528 = vmatprep.subr.mxu0 0.0
    %1529 = vmatpush1.msra.mxu0 %v112
    %1530 = vmatprep.subr.mxu0 0.0
    %1531 = vmatpush1.msra.mxu0 %v113
    %1532 = vmatprep.subr.mxu0 0.0
    %1533 = vmatpush1.msra.mxu0 %v114
    %1534 = vmatprep.subr.mxu0 0.0
    %1535 = vmatpush1.msra.mxu0 %v115
    %1536 = vmatprep.subr.mxu0 0.0
    %1537 = vmatpush1.msra.mxu0 %v116
    %1538 = vmatprep.subr.mxu0 0.0
    %1539 = vmatpush1.msra.mxu0 %v117
    %1540 = vmatprep.subr.mxu0 0.0
    %1541 = vmatpush1.msra.mxu0 %v118
    %1542 = vmatprep.subr.mxu0 0.0
    %1543 = vmatpush1.msra.mxu0 %v119
    %1544 = vmatprep.subr.mxu0 0.0
    %1545 = vmatpush1.msra.mxu0 0.0
    %1546 = vmatprep.subr.mxu0 0.0
    %1547 = vmatpush1.msra.mxu0 0.0
    %1548 = vmatprep.subr.mxu0 0.0
    %1549 = vmatpush1.msra.mxu0 0.0
    %1550 = vmatprep.subr.mxu0 0.0
    %1551 = vmatpush1.msra.mxu0 0.0
    %1552 = vmatprep.subr.mxu0 0.0
    %1553 = vmatpush1.msra.mxu0 0.0
    %1554 = vmatprep.subr.mxu0 0.0
    %1555 = vmatpush1.msra.mxu0 0.0
    %1556 = vmatprep.subr.mxu0 0.0
    %1557 = vmatpush1.msra.mxu0 0.0
    %1558 = vmatprep.subr.mxu0 0.0
    %1559 = vmatpush1.msra.mxu0 0.0
    %1560 = vmatprep.subr.mxu0 0.0
    %1561 = vmatpush1.msra.mxu0 0.0
    %1562 = vmatprep.subr.mxu0 0.0
    %1563 = vmatpush1.msra.mxu0 0.0
    %1564 = vmatprep.subr.mxu0 0.0
    %1565 = vmatpush1.msra.mxu0 0.0
    %1566 = vmatprep.subr.mxu0 0.0
    %1567 = vmatpush1.msra.mxu0 0.0
    %1568 = vmatprep.subr.mxu0 0.0
    %1569 = vmatpush1.msra.mxu0 0.0
    %1570 = vmatprep.subr.mxu0 0.0
    %1571 = vmatpush1.msra.mxu0 0.0
    %1572 = vmatprep.subr.mxu0 0.0
    %1573 = vmatpush1.msra.mxu0 0.0
    %1574 = vmatprep.subr.mxu0 0.0
    %1575 = vmatpush1.msra.mxu0 0.0
    %1576 = vmatprep.mubr.f32.mxu0 0.0
    %1577 = vmatmul.mubr.f32.gmra.mrb[0].mxu0 %v1498
    %v1578 = vpop.f32.mrb[0].mxu0
    %v1579 = vadd.f32 0.0, %v1578
    %v1580 = vpop.f32.mrb[0].mxu0
    %1581 = vdwg.mxu0
    %v1582 = vmul.f32 %v1579, 0.001953125
    %1583 = vmatprep.subr.mxu0 0.0
    %1584 = vmatpush1.msra.mxu0 %v104
    %1585 = vmatprep.subr.mxu0 0.0
    %1586 = vmatpush1.msra.mxu0 %v105
    %1587 = vmatprep.subr.mxu0 0.0
    %1588 = vmatpush1.msra.mxu0 %v106
    %1589 = vmatprep.subr.mxu0 0.0
    %1590 = vmatpush1.msra.mxu0 %v107
    %1591 = vmatprep.subr.mxu0 0.0
    %1592 = vmatpush1.msra.mxu0 %v108
    %1593 = vmatprep.subr.mxu0 0.0
    %1594 = vmatpush1.msra.mxu0 %v109
    %1595 = vmatprep.subr.mxu0 0.0
    %1596 = vmatpush1.msra.mxu0 %v110
    %1597 = vmatprep.subr.mxu0 0.0
    %1598 = vmatpush1.msra.mxu0 %v111
    %1599 = vmatprep.subr.mxu0 0.0
    %1600 = vmatpush1.msra.mxu0 %v112
    %1601 = vmatprep.subr.mxu0 0.0
    %1602 = vmatpush1.msra.mxu0 %v113
    %1603 = vmatprep.subr.mxu0 0.0
    %1604 = vmatpush1.msra.mxu0 %v114
    %1605 = vmatprep.subr.mxu0 0.0
    %1606 = vmatpush1.msra.mxu0 %v115
    %1607 = vmatprep.subr.mxu0 0.0
    %1608 = vmatpush1.msra.mxu0 %v116
    %1609 = vmatprep.subr.mxu0 0.0
    %1610 = vmatpush1.msra.mxu0 %v117
    %1611 = vmatprep.subr.mxu0 0.0
    %1612 = vmatpush1.msra.mxu0 %v118
    %1613 = vmatprep.subr.mxu0 0.0
    %1614 = vmatpush1.msra.mxu0 %v119
    %1615 = vmatprep.subr.mxu0 0.0
    %1616 = vmatpush1.msra.mxu0 0.0
    %1617 = vmatprep.subr.mxu0 0.0
    %1618 = vmatpush1.msra.mxu0 0.0
    %1619 = vmatprep.subr.mxu0 0.0
    %1620 = vmatpush1.msra.mxu0 0.0
    %1621 = vmatprep.subr.mxu0 0.0
    %1622 = vmatpush1.msra.mxu0 0.0
    %1623 = vmatprep.subr.mxu0 0.0
    %1624 = vmatpush1.msra.mxu0 0.0
    %1625 = vmatprep.subr.mxu0 0.0
    %1626 = vmatpush1.msra.mxu0 0.0
    %1627 = vmatprep.subr.mxu0 0.0
    %1628 = vmatpush1.msra.mxu0 0.0
    %1629 = vmatprep.subr.mxu0 0.0
    %1630 = vmatpush1.msra.mxu0 0.0
    %1631 = vmatprep.subr.mxu0 0.0
    %1632 = vmatpush1.msra.mxu0 0.0
    %1633 = vmatprep.subr.mxu0 0.0
    %1634 = vmatpush1.msra.mxu0 0.0
    %1635 = vmatprep.subr.mxu0 0.0
    %1636 = vmatpush1.msra.mxu0 0.0
    %1637 = vmatprep.subr.mxu0 0.0
    %1638 = vmatpush1.msra.mxu0 0.0
    %1639 = vmatprep.subr.mxu0 0.0
    %1640 = vmatpush1.msra.mxu0 0.0
    %1641 = vmatprep.subr.mxu0 0.0
    %1642 = vmatpush1.msra.mxu0 0.0
    %1643 = vmatprep.subr.mxu0 0.0
    %1644 = vmatpush1.msra.mxu0 0.0
    %1645 = vmatprep.subr.mxu0 0.0
    %1646 = vmatpush1.msra.mxu0 0.0
    %1647 = vmatprep.mubr.f32.mxu0 0.0
    %1648 = vmatmul.mubr.f32.gmra.mrb[0].mxu0 %v1511
    %v1649 = vpop.f32.mrb[0].mxu0
    %v1650 = vadd.f32 0.0, %v1649
    %v1651 = vpop.f32.mrb[0].mxu0
    %1652 = vdwg.mxu0
    %v1653 = vmul.f32 %v1650, 0.001953125
    %v1654 = vmul.f32 %v1582, %v1582
    %v1655 = vsub.f32 %v1653, %v1654
    %v1656 = vld [vmem:[%s3 + $0x2] sm:$0x1]
    %v1657 = vadd.f32 %v1655, 1e-05
    %v1658 = vrsqrt.pop %v1657
    %v1659 = vmul.f32 %v1656, %v1658
    %v1660 = vld [vmem:[%s4 + $0x2] sm:$0x1]
    %v1661 = vmul.f32 %v1582, %v1659
    %v1662 = vsub.f32 %v1660, %v1661
    %v1663 = vlaneseq
    %v1664 = vshrl.u32 %v1663, 7
    %v1665 = vsub.s32 0, %v1664
    %v1666 = vrot.slane %v1659, %v1665
    %v1667 = vmul.f32 %v1486, %v1666
    %v1668 = vmul.f32 %v1487, %v1666
    %v1669 = vmul.f32 %v1488, %v1666
    %v1670 = vmul.f32 %v1489, %v1666
    %v1671 = vlaneseq
    %v1672 = vshrl.u32 %v1671, 7
    %v1673 = vsub.s32 0, %v1672
    %v1674 = vrot.slane %v1662, %v1673
    %v1675 = vadd.f32 %v1667, %v1674
    %v1676 = vadd.f32 %v1668, %v1674
    %v1677 = vadd.f32 %v1669, %v1674
    %v1678 = vadd.f32 %v1670, %v1674
    %v1679 = vmax.f32 %v1675, 0.0
    %v1680 = vmax.f32 %v1676, 0.0
    %v1681 = vmax.f32 %v1677, 0.0
    %v1682 = vmax.f32 %v1678, 0.0
    %1683 = vst [vmem:[#allocation3 + $0x8] sm:$0xff] %v1679
    %1684 = vst [vmem:[#allocation3 + $0x10] sm:$0xff] %v1680
    %1685 = vst [vmem:[#allocation3 + $0x28] sm:$0xff] %v1681
    %1686 = vst [vmem:[#allocation3 + $0x30] sm:$0xff] %v1682
    %s1687 = scalar_lea.vmem [#allocation9], 768
    %v1688 = vld [vmem:[%s1687] sm:$0xff]
    %v1689 = vld [vmem:[%s1687 + $0x8] sm:$0xff]
    %v1690 = vld [vmem:[%s1687 + $0x10] sm:$0xff]
    %v1691 = vld [vmem:[%s1687 + $0x18] sm:$0xff]
    %v1692 = vld [vmem:[%s1687 + $0x20] sm:$0xff]
    %v1693 = vld [vmem:[%s1687 + $0x28] sm:$0xff]
    %v1694 = vld [vmem:[%s1687 + $0x30] sm:$0xff]
    %v1695 = vld [vmem:[%s1687 + $0x38] sm:$0xff]
    %v1696 = vld [vmem:[%s1687 + $0x40] sm:$0xff]
    %v1697 = vld [vmem:[%s1687 + $0x48] sm:$0xff]
    %v1698 = vld [vmem:[%s1687 + $0x50] sm:$0xff]
    %v1699 = vld [vmem:[%s1687 + $0x58] sm:$0xff]
    %v1700 = vld [vmem:[%s1687 + $0x60] sm:$0xff]
    %v1701 = vld [vmem:[%s1687 + $0x68] sm:$0xff]
    %v1702 = vld [vmem:[%s1687 + $0x70] sm:$0xff]
    %v1703 = vld [vmem:[%s1687 + $0x78] sm:$0xff]
    %v1704 = vld [vmem:[#allocation3 + $0x7] sm:$0xff]
    %v1705 = vld [vmem:[#allocation3 + $0xf] sm:$0xff]
    %v1706 = vld [vmem:[#allocation3 + $0x27] sm:$0xff]
    %v1707 = vld [vmem:[#allocation3 + $0x2f] sm:$0xff]
    %s1708 = scalar_lea.vmem [#allocation9], 896
    %v1709 = vld [vmem:[%s1708] sm:$0xff]
    %v1710 = vld [vmem:[%s1708 + $0x8] sm:$0xff]
    %v1711 = vld [vmem:[%s1708 + $0x10] sm:$0xff]
    %v1712 = vld [vmem:[%s1708 + $0x18] sm:$0xff]
    %v1713 = vld [vmem:[%s1708 + $0x20] sm:$0xff]
    %v1714 = vld [vmem:[%s1708 + $0x28] sm:$0xff]
    %v1715 = vld [vmem:[%s1708 + $0x30] sm:$0xff]
    %v1716 = vld [vmem:[%s1708 + $0x38] sm:$0xff]
    %v1717 = vld [vmem:[%s1708 + $0x40] sm:$0xff]
    %v1718 = vld [vmem:[%s1708 + $0x48] sm:$0xff]
    %v1719 = vld [vmem:[%s1708 + $0x50] sm:$0xff]
    %v1720 = vld [vmem:[%s1708 + $0x58] sm:$0xff]
    %v1721 = vld [vmem:[%s1708 + $0x60] sm:$0xff]
    %v1722 = vld [vmem:[%s1708 + $0x68] sm:$0xff]
    %v1723 = vld [vmem:[%s1708 + $0x70] sm:$0xff]
    %v1724 = vld [vmem:[%s1708 + $0x78] sm:$0xff]
    %v1725 = vld [vmem:[#allocation3 + $0x8] sm:$0xff]
    %v1726 = vld [vmem:[#allocation3 + $0x10] sm:$0xff]
    %v1727 = vld [vmem:[#allocation3 + $0x28] sm:$0xff]
    %v1728 = vld [vmem:[#allocation3 + $0x30] sm:$0xff]
    %1729 = vmatprep.subr.mxu0 0.0
    %1730 = vmatpush1.msra.mxu0 %v1709
    %1731 = vmatprep.subr.mxu0 0.0
    %1732 = vmatpush1.msra.mxu0 %v1710
    %1733 = vmatprep.subr.mxu0 0.0
    %1734 = vmatpush1.msra.mxu0 %v1711
    %1735 = vmatprep.subr.mxu0 0.0
    %1736 = vmatpush1.msra.mxu0 %v1712
    %1737 = vmatprep.subr.mxu0 0.0
    %1738 = vmatpush1.msra.mxu0 %v1713
    %1739 = vmatprep.subr.mxu0 0.0
    %1740 = vmatpush1.msra.mxu0 %v1714
    %1741 = vmatprep.subr.mxu0 0.0
    %1742 = vmatpush1.msra.mxu0 %v1715
    %1743 = vmatprep.subr.mxu0 0.0
    %1744 = vmatpush1.msra.mxu0 %v1716
    %1745 = vmatprep.subr.mxu0 0.0
    %1746 = vmatpush1.msra.mxu0 %v1717
    %1747 = vmatprep.subr.mxu0 0.0
    %1748 = vmatpush1.msra.mxu0 %v1718
    %1749 = vmatprep.subr.mxu0 0.0
    %1750 = vmatpush1.msra.mxu0 %v1719
    %1751 = vmatprep.subr.mxu0 0.0
    %1752 = vmatpush1.msra.mxu0 %v1720
    %1753 = vmatprep.subr.mxu0 0.0
    %1754 = vmatpush1.msra.mxu0 %v1721
    %1755 = vmatprep.subr.mxu0 0.0
    %1756 = vmatpush1.msra.mxu0 %v1722
    %1757 = vmatprep.subr.mxu0 0.0
    %1758 = vmatpush1.msra.mxu0 %v1723
    %1759 = vmatprep.subr.mxu0 0.0
    %1760 = vmatpush1.msra.mxu0 %v1724
    %1761 = vmatprep.subr.mxu0 0.0
    %1762 = vmatpush1.msra.mxu0 0.0
    %1763 = vmatprep.subr.mxu0 0.0
    %1764 = vmatpush1.msra.mxu0 0.0
    %1765 = vmatprep.subr.mxu0 0.0
    %1766 = vmatpush1.msra.mxu0 0.0
    %1767 = vmatprep.subr.mxu0 0.0
    %1768 = vmatpush1.msra.mxu0 0.0
    %1769 = vmatprep.subr.mxu0 0.0
    %1770 = vmatpush1.msra.mxu0 0.0
    %1771 = vmatprep.subr.mxu0 0.0
    %1772 = vmatpush1.msra.mxu0 0.0
    %1773 = vmatprep.subr.mxu0 0.0
    %1774 = vmatpush1.msra.mxu0 0.0
    %1775 = vmatprep.subr.mxu0 0.0
    %1776 = vmatpush1.msra.mxu0 0.0
    %1777 = vmatprep.subr.mxu0 0.0
    %1778 = vmatpush1.msra.mxu0 0.0
    %1779 = vmatprep.subr.mxu0 0.0
    %1780 = vmatpush1.msra.mxu0 0.0
    %1781 = vmatprep.subr.mxu0 0.0
    %1782 = vmatpush1.msra.mxu0 0.0
    %1783 = vmatprep.subr.mxu0 0.0
    %1784 = vmatpush1.msra.mxu0 0.0
    %1785 = vmatprep.subr.mxu0 0.0
    %1786 = vmatpush1.msra.mxu0 0.0
    %1787 = vmatprep.subr.mxu0 0.0
    %1788 = vmatpush1.msra.mxu0 0.0
    %1789 = vmatprep.subr.mxu0 0.0
    %1790 = vmatpush1.msra.mxu0 0.0
    %1791 = vmatprep.subr.mxu0 0.0
    %1792 = vmatpush1.msra.mxu0 0.0
    %1793 = vmatprep.mubr.f32.mxu0 0.0
    %1794 = vmatmul.mubr.f32.gmra.mrb[0].mxu0 %v1725
    %v1795 = vpop.f32.mrb[0].mxu0
    %v1796 = vadd.f32 0.0, %v1795
    %v1797 = vpop.f32.mrb[0].mxu0
    %1798 = vmatprep.mubr.f32.mxu0 0.0
    %1799 = vmatmul.mubr.f32.gmra.mrb[0].mxu0 %v1726
    %v1800 = vpop.f32.mrb[0].mxu0
    %v1801 = vadd.f32 0.0, %v1800
    %v1802 = vpop.f32.mrb[0].mxu0
    %1803 = vmatprep.mubr.f32.mxu0 0.0
    %1804 = vmatmul.mubr.f32.gmra.mrb[0].mxu0 %v1727
    %v1805 = vpop.f32.mrb[0].mxu0
    %v1806 = vadd.f32 0.0, %v1805
    %v1807 = vpop.f32.mrb[0].mxu0
    %1808 = vmatprep.mubr.f32.mxu0 0.0
    %1809 = vmatmul.mubr.f32.gmra.mrb[0].mxu0 %v1728
    %v1810 = vpop.f32.mrb[0].mxu0
    %v1811 = vadd.f32 0.0, %v1810
    %v1812 = vpop.f32.mrb[0].mxu0
    %1813 = vdwg.mxu0
    %1814 = vmatprep.subr.mxu0 0.0
    %1815 = vmatpush1.msra.mxu0 %v1688
    %1816 = vmatprep.subr.mxu0 0.0
    %1817 = vmatpush1.msra.mxu0 %v1689
    %1818 = vmatprep.subr.mxu0 0.0
    %1819 = vmatpush1.msra.mxu0 %v1690
    %1820 = vmatprep.subr.mxu0 0.0
    %1821 = vmatpush1.msra.mxu0 %v1691
    %1822 = vmatprep.subr.mxu0 0.0
    %1823 = vmatpush1.msra.mxu0 %v1692
    %1824 = vmatprep.subr.mxu0 0.0
    %1825 = vmatpush1.msra.mxu0 %v1693
    %1826 = vmatprep.subr.mxu0 0.0
    %1827 = vmatpush1.msra.mxu0 %v1694
    %1828 = vmatprep.subr.mxu0 0.0
    %1829 = vmatpush1.msra.mxu0 %v1695
    %1830 = vmatprep.subr.mxu0 0.0
    %1831 = vmatpush1.msra.mxu0 %v1696
    %1832 = vmatprep.subr.mxu0 0.0
    %1833 = vmatpush1.msra.mxu0 %v1697
    %1834 = vmatprep.subr.mxu0 0.0
    %1835 = vmatpush1.msra.mxu0 %v1698
    %1836 = vmatprep.subr.mxu0 0.0
    %1837 = vmatpush1.msra.mxu0 %v1699
    %1838 = vmatprep.subr.mxu0 0.0
    %1839 = vmatpush1.msra.mxu0 %v1700
    %1840 = vmatprep.subr.mxu0 0.0
    %1841 = vmatpush1.msra.mxu0 %v1701
    %1842 = vmatprep.subr.mxu0 0.0
    %1843 = vmatpush1.msra.mxu0 %v1702
    %1844 = vmatprep.subr.mxu0 0.0
    %1845 = vmatpush1.msra.mxu0 %v1703
    %1846 = vmatprep.subr.mxu0 0.0
    %1847 = vmatpush1.msra.mxu0 0.0
    %1848 = vmatprep.subr.mxu0 0.0
    %1849 = vmatpush1.msra.mxu0 0.0
    %1850 = vmatprep.subr.mxu0 0.0
    %1851 = vmatpush1.msra.mxu0 0.0
    %1852 = vmatprep.subr.mxu0 0.0
    %1853 = vmatpush1.msra.mxu0 0.0
    %1854 = vmatprep.subr.mxu0 0.0
    %1855 = vmatpush1.msra.mxu0 0.0
    %1856 = vmatprep.subr.mxu0 0.0
    %1857 = vmatpush1.msra.mxu0 0.0
    %1858 = vmatprep.subr.mxu0 0.0
    %1859 = vmatpush1.msra.mxu0 0.0
    %1860 = vmatprep.subr.mxu0 0.0
    %1861 = vmatpush1.msra.mxu0 0.0
    %1862 = vmatprep.subr.mxu0 0.0
    %1863 = vmatpush1.msra.mxu0 0.0
    %1864 = vmatprep.subr.mxu0 0.0
    %1865 = vmatpush1.msra.mxu0 0.0
    %1866 = vmatprep.subr.mxu0 0.0
    %1867 = vmatpush1.msra.mxu0 0.0
    %1868 = vmatprep.subr.mxu0 0.0
    %1869 = vmatpush1.msra.mxu0 0.0
    %1870 = vmatprep.subr.mxu0 0.0
    %1871 = vmatpush1.msra.mxu0 0.0
    %1872 = vmatprep.subr.mxu0 0.0
    %1873 = vmatpush1.msra.mxu0 0.0
    %1874 = vmatprep.subr.mxu0 0.0
    %1875 = vmatpush1.msra.mxu0 0.0
    %1876 = vmatprep.subr.mxu0 0.0
    %1877 = vmatpush1.msra.mxu0 0.0
    %1878 = vmatprep.mubr.f32.mxu0 0.0
    %1879 = vmatmul.mubr.f32.gmra.mrb[0].mxu0 %v1704
    %v1880 = vpop.f32.mrb[0].mxu0
    %v1881 = vadd.f32 %v1796, %v1880
    %v1882 = vpop.f32.mrb[0].mxu0
    %1883 = vmatprep.mubr.f32.mxu0 0.0
    %1884 = vmatmul.mubr.f32.gmra.mrb[0].mxu0 %v1705
    %v1885 = vpop.f32.mrb[0].mxu0
    %v1886 = vadd.f32 %v1801, %v1885
    %v1887 = vpop.f32.mrb[0].mxu0
    %1888 = vmatprep.mubr.f32.mxu0 0.0
    %1889 = vmatmul.mubr.f32.gmra.mrb[0].mxu0 %v1706
    %v1890 = vpop.f32.mrb[0].mxu0
    %v1891 = vadd.f32 %v1806, %v1890
    %v1892 = vpop.f32.mrb[0].mxu0
    %1893 = vmatprep.mubr.f32.mxu0 0.0
    %1894 = vmatmul.mubr.f32.gmra.mrb[0].mxu0 %v1707
    %v1895 = vpop.f32.mrb[0].mxu0
    %v1896 = vadd.f32 %v1811, %v1895
    %v1897 = vpop.f32.mrb[0].mxu0
    %1898 = vdwg.mxu0
    %s1899 = scalar_lea.vmem [#allocation9], 1024
    %v1900 = vld [vmem:[%s1899] sm:$0xff]
    %v1901 = vld [vmem:[%s1899 + $0x8] sm:$0xff]
    %v1902 = vld [vmem:[%s1899 + $0x10] sm:$0xff]
    %v1903 = vld [vmem:[%s1899 + $0x18] sm:$0xff]
    %v1904 = vld [vmem:[%s1899 + $0x20] sm:$0xff]
    %v1905 = vld [vmem:[%s1899 + $0x28] sm:$0xff]
    %v1906 = vld [vmem:[%s1899 + $0x30] sm:$0xff]
    %v1907 = vld [vmem:[%s1899 + $0x38] sm:$0xff]
    %v1908 = vld [vmem:[%s1899 + $0x40] sm:$0xff]
    %v1909 = vld [vmem:[%s1899 + $0x48] sm:$0xff]
    %v1910 = vld [vmem:[%s1899 + $0x50] sm:$0xff]
    %v1911 = vld [vmem:[%s1899 + $0x58] sm:$0xff]
    %v1912 = vld [vmem:[%s1899 + $0x60] sm:$0xff]
    %v1913 = vld [vmem:[%s1899 + $0x68] sm:$0xff]
    %v1914 = vld [vmem:[%s1899 + $0x70] sm:$0xff]
    %v1915 = vld [vmem:[%s1899 + $0x78] sm:$0xff]
    %v1916 = vld [vmem:[#allocation3 + $0x9] sm:$0xff]
    %v1917 = vld [vmem:[#allocation3 + $0x11] sm:$0xff]
    %v1918 = vld [vmem:[#allocation3 + $0x29] sm:$0xff]
    %v1919 = vld [vmem:[#allocation3 + $0x31] sm:$0xff]
    %1920 = vmatprep.subr.mxu0 0.0
    %1921 = vmatpush1.msra.mxu0 %v1900
    %1922 = vmatprep.subr.mxu0 0.0
    %1923 = vmatpush1.msra.mxu0 %v1901
    %1924 = vmatprep.subr.mxu0 0.0
    %1925 = vmatpush1.msra.mxu0 %v1902
    %1926 = vmatprep.subr.mxu0 0.0
    %1927 = vmatpush1.msra.mxu0 %v1903
    %1928 = vmatprep.subr.mxu0 0.0
    %1929 = vmatpush1.msra.mxu0 %v1904
    %1930 = vmatprep.subr.mxu0 0.0
    %1931 = vmatpush1.msra.mxu0 %v1905
    %1932 = vmatprep.subr.mxu0 0.0
    %1933 = vmatpush1.msra.mxu0 %v1906
    %1934 = vmatprep.subr.mxu0 0.0
    %1935 = vmatpush1.msra.mxu0 %v1907
    %1936 = vmatprep.subr.mxu0 0.0
    %1937 = vmatpush1.msra.mxu0 %v1908
    %1938 = vmatprep.subr.mxu0 0.0
    %1939 = vmatpush1.msra.mxu0 %v1909
    %1940 = vmatprep.subr.mxu0 0.0
    %1941 = vmatpush1.msra.mxu0 %v1910
    %1942 = vmatprep.subr.mxu0 0.0
    %1943 = vmatpush1.msra.mxu0 %v1911
    %1944 = vmatprep.subr.mxu0 0.0
    %1945 = vmatpush1.msra.mxu0 %v1912
    %1946 = vmatprep.subr.mxu0 0.0
    %1947 = vmatpush1.msra.mxu0 %v1913
    %1948 = vmatprep.subr.mxu0 0.0
    %1949 = vmatpush1.msra.mxu0 %v1914
    %1950 = vmatprep.subr.mxu0 0.0
    %1951 = vmatpush1.msra.mxu0 %v1915
    %1952 = vmatprep.subr.mxu0 0.0
    %1953 = vmatpush1.msra.mxu0 0.0
    %1954 = vmatprep.subr.mxu0 0.0
    %1955 = vmatpush1.msra.mxu0 0.0
    %1956 = vmatprep.subr.mxu0 0.0
    %1957 = vmatpush1.msra.mxu0 0.0
    %1958 = vmatprep.subr.mxu0 0.0
    %1959 = vmatpush1.msra.mxu0 0.0
    %1960 = vmatprep.subr.mxu0 0.0
    %1961 = vmatpush1.msra.mxu0 0.0
    %1962 = vmatprep.subr.mxu0 0.0
    %1963 = vmatpush1.msra.mxu0 0.0
    %1964 = vmatprep.subr.mxu0 0.0
    %1965 = vmatpush1.msra.mxu0 0.0
    %1966 = vmatprep.subr.mxu0 0.0
    %1967 = vmatpush1.msra.mxu0 0.0
    %1968 = vmatprep.subr.mxu0 0.0
    %1969 = vmatpush1.msra.mxu0 0.0
    %1970 = vmatprep.subr.mxu0 0.0
    %1971 = vmatpush1.msra.mxu0 0.0
    %1972 = vmatprep.subr.mxu0 0.0
    %1973 = vmatpush1.msra.mxu0 0.0
    %1974 = vmatprep.subr.mxu0 0.0
    %1975 = vmatpush1.msra.mxu0 0.0
    %1976 = vmatprep.subr.mxu0 0.0
    %1977 = vmatpush1.msra.mxu0 0.0
    %1978 = vmatprep.subr.mxu0 0.0
    %1979 = vmatpush1.msra.mxu0 0.0
    %1980 = vmatprep.subr.mxu0 0.0
    %1981 = vmatpush1.msra.mxu0 0.0
    %1982 = vmatprep.subr.mxu0 0.0
    %1983 = vmatpush1.msra.mxu0 0.0
    %1984 = vmatprep.mubr.f32.mxu0 0.0
    %1985 = vmatmul.mubr.f32.gmra.mrb[0].mxu0 %v1916
    %v1986 = vpop.f32.mrb[0].mxu0
    %v1987 = vadd.f32 0.0, %v1986
    %v1988 = vpop.f32.mrb[0].mxu0
    %1989 = vmatprep.mubr.f32.mxu0 0.0
    %1990 = vmatmul.mubr.f32.gmra.mrb[0].mxu0 %v1917
    %v1991 = vpop.f32.mrb[0].mxu0
    %v1992 = vadd.f32 0.0, %v1991
    %v1993 = vpop.f32.mrb[0].mxu0
    %1994 = vmatprep.mubr.f32.mxu0 0.0
    %1995 = vmatmul.mubr.f32.gmra.mrb[0].mxu0 %v1918
    %v1996 = vpop.f32.mrb[0].mxu0
    %v1997 = vadd.f32 0.0, %v1996
    %v1998 = vpop.f32.mrb[0].mxu0
    %1999 = vmatprep.mubr.f32.mxu0 0.0
    %2000 = vmatmul.mubr.f32.gmra.mrb[0].mxu0 %v1919
    %v2001 = vpop.f32.mrb[0].mxu0
    %v2002 = vadd.f32 0.0, %v2001
    %v2003 = vpop.f32.mrb[0].mxu0
    %2004 = vdwg.mxu0
    %v2005 = vadd.f32 %v1881, %v1987
    %v2006 = vadd.f32 %v1886, %v1992
    %v2007 = vadd.f32 %v1891, %v1997
    %v2008 = vadd.f32 %v1896, %v2002
    %v2009 = vadd.f32 %v2005, %v2006
    %v2010 = vadd.f32 %v2009, %v2007
    %v2011 = vadd.f32 %v2010, %v2008
    %v2012 = vrot.slane %v2011, 4
    %v2013 = vadd.f32 %v2011, %v2012
    %v2014 = vrot.slane %v2013, 2
    %v2015 = vadd.f32 %v2013, %v2014
    %v2016 = vrot.slane %v2015, 1
    %v2017 = vadd.f32 %v2015, %v2016
    %v2018 = vmul.f32 %v2005, %v2005
    %v2019 = vmul.f32 %v2006, %v2006
    %v2020 = vmul.f32 %v2007, %v2007
    %v2021 = vmul.f32 %v2008, %v2008
    %v2022 = vadd.f32 %v2018, %v2019
    %v2023 = vadd.f32 %v2022, %v2020
    %v2024 = vadd.f32 %v2023, %v2021
    %v2025 = vrot.slane %v2024, 4
    %v2026 = vadd.f32 %v2024, %v2025
    %v2027 = vrot.slane %v2026, 2
    %v2028 = vadd.f32 %v2026, %v2027
    %v2029 = vrot.slane %v2028, 1
    %v2030 = vadd.f32 %v2028, %v2029
    %2031 = vmatprep.subr.mxu0 0.0
    %2032 = vmatpush1.msra.mxu0 %v104
    %2033 = vmatprep.subr.mxu0 0.0
    %2034 = vmatpush1.msra.mxu0 %v105
    %2035 = vmatprep.subr.mxu0 0.0
    %2036 = vmatpush1.msra.mxu0 %v106
    %2037 = vmatprep.subr.mxu0 0.0
    %2038 = vmatpush1.msra.mxu0 %v107
    %2039 = vmatprep.subr.mxu0 0.0
    %2040 = vmatpush1.msra.mxu0 %v108
    %2041 = vmatprep.subr.mxu0 0.0
    %2042 = vmatpush1.msra.mxu0 %v109
    %2043 = vmatprep.subr.mxu0 0.0
    %2044 = vmatpush1.msra.mxu0 %v110
    %2045 = vmatprep.subr.mxu0 0.0
    %2046 = vmatpush1.msra.mxu0 %v111
    %2047 = vmatprep.subr.mxu0 0.0
    %2048 = vmatpush1.msra.mxu0 %v112
    %2049 = vmatprep.subr.mxu0 0.0
    %2050 = vmatpush1.msra.mxu0 %v113
    %2051 = vmatprep.subr.mxu0 0.0
    %2052 = vmatpush1.msra.mxu0 %v114
    %2053 = vmatprep.subr.mxu0 0.0
    %2054 = vmatpush1.msra.mxu0 %v115
    %2055 = vmatprep.subr.mxu0 0.0
    %2056 = vmatpush1.msra.mxu0 %v116
    %2057 = vmatprep.subr.mxu0 0.0
    %2058 = vmatpush1.msra.mxu0 %v117
    %2059 = vmatprep.subr.mxu0 0.0
    %2060 = vmatpush1.msra.mxu0 %v118
    %2061 = vmatprep.subr.mxu0 0.0
    %2062 = vmatpush1.msra.mxu0 %v119
    %2063 = vmatprep.subr.mxu0 0.0
    %2064 = vmatpush1.msra.mxu0 0.0
    %2065 = vmatprep.subr.mxu0 0.0
    %2066 = vmatpush1.msra.mxu0 0.0
    %2067 = vmatprep.subr.mxu0 0.0
    %2068 = vmatpush1.msra.mxu0 0.0
    %2069 = vmatprep.subr.mxu0 0.0
    %2070 = vmatpush1.msra.mxu0 0.0
    %2071 = vmatprep.subr.mxu0 0.0
    %2072 = vmatpush1.msra.mxu0 0.0
    %2073 = vmatprep.subr.mxu0 0.0
    %2074 = vmatpush1.msra.mxu0 0.0
    %2075 = vmatprep.subr.mxu0 0.0
    %2076 = vmatpush1.msra.mxu0 0.0
    %2077 = vmatprep.subr.mxu0 0.0
    %2078 = vmatpush1.msra.mxu0 0.0
    %2079 = vmatprep.subr.mxu0 0.0
    %2080 = vmatpush1.msra.mxu0 0.0
    %2081 = vmatprep.subr.mxu0 0.0
    %2082 = vmatpush1.msra.mxu0 0.0
    %2083 = vmatprep.subr.mxu0 0.0
    %2084 = vmatpush1.msra.mxu0 0.0
    %2085 = vmatprep.subr.mxu0 0.0
    %2086 = vmatpush1.msra.mxu0 0.0
    %2087 = vmatprep.subr.mxu0 0.0
    %2088 = vmatpush1.msra.mxu0 0.0
    %2089 = vmatprep.subr.mxu0 0.0
    %2090 = vmatpush1.msra.mxu0 0.0
    %2091 = vmatprep.subr.mxu0 0.0
    %2092 = vmatpush1.msra.mxu0 0.0
    %2093 = vmatprep.subr.mxu0 0.0
    %2094 = vmatpush1.msra.mxu0 0.0
    %2095 = vmatprep.mubr.f32.mxu0 0.0
    %2096 = vmatmul.mubr.f32.gmra.mrb[0].mxu0 %v2017
    %v2097 = vpop.f32.mrb[0].mxu0
    %v2098 = vadd.f32 0.0, %v2097
    %v2099 = vpop.f32.mrb[0].mxu0
    %2100 = vdwg.mxu0
    %v2101 = vmul.f32 %v2098, 0.001953125
    %2102 = vmatprep.subr.mxu0 0.0
    %2103 = vmatpush1.msra.mxu0 %v104
    %2104 = vmatprep.subr.mxu0 0.0
    %2105 = vmatpush1.msra.mxu0 %v105
    %2106 = vmatprep.subr.mxu0 0.0
    %2107 = vmatpush1.msra.mxu0 %v106
    %2108 = vmatprep.subr.mxu0 0.0
    %2109 = vmatpush1.msra.mxu0 %v107
    %2110 = vmatprep.subr.mxu0 0.0
    %2111 = vmatpush1.msra.mxu0 %v108
    %2112 = vmatprep.subr.mxu0 0.0
    %2113 = vmatpush1.msra.mxu0 %v109
    %2114 = vmatprep.subr.mxu0 0.0
    %2115 = vmatpush1.msra.mxu0 %v110
    %2116 = vmatprep.subr.mxu0 0.0
    %2117 = vmatpush1.msra.mxu0 %v111
    %2118 = vmatprep.subr.mxu0 0.0
    %2119 = vmatpush1.msra.mxu0 %v112
    %2120 = vmatprep.subr.mxu0 0.0
    %2121 = vmatpush1.msra.mxu0 %v113
    %2122 = vmatprep.subr.mxu0 0.0
    %2123 = vmatpush1.msra.mxu0 %v114
    %2124 = vmatprep.subr.mxu0 0.0
    %2125 = vmatpush1.msra.mxu0 %v115
    %2126 = vmatprep.subr.mxu0 0.0
    %2127 = vmatpush1.msra.mxu0 %v116
    %2128 = vmatprep.subr.mxu0 0.0
    %2129 = vmatpush1.msra.mxu0 %v117
    %2130 = vmatprep.subr.mxu0 0.0
    %2131 = vmatpush1.msra.mxu0 %v118
    %2132 = vmatprep.subr.mxu0 0.0
    %2133 = vmatpush1.msra.mxu0 %v119
    %2134 = vmatprep.subr.mxu0 0.0
    %2135 = vmatpush1.msra.mxu0 0.0
    %2136 = vmatprep.subr.mxu0 0.0
    %2137 = vmatpush1.msra.mxu0 0.0
    %2138 = vmatprep.subr.mxu0 0.0
    %2139 = vmatpush1.msra.mxu0 0.0
    %2140 = vmatprep.subr.mxu0 0.0
    %2141 = vmatpush1.msra.mxu0 0.0
    %2142 = vmatprep.subr.mxu0 0.0
    %2143 = vmatpush1.msra.mxu0 0.0
    %2144 = vmatprep.subr.mxu0 0.0
    %2145 = vmatpush1.msra.mxu0 0.0
    %2146 = vmatprep.subr.mxu0 0.0
    %2147 = vmatpush1.msra.mxu0 0.0
    %2148 = vmatprep.subr.mxu0 0.0
    %2149 = vmatpush1.msra.mxu0 0.0
    %2150 = vmatprep.subr.mxu0 0.0
    %2151 = vmatpush1.msra.mxu0 0.0
    %2152 = vmatprep.subr.mxu0 0.0
    %2153 = vmatpush1.msra.mxu0 0.0
    %2154 = vmatprep.subr.mxu0 0.0
    %2155 = vmatpush1.msra.mxu0 0.0
    %2156 = vmatprep.subr.mxu0 0.0
    %2157 = vmatpush1.msra.mxu0 0.0
    %2158 = vmatprep.subr.mxu0 0.0
    %2159 = vmatpush1.msra.mxu0 0.0
    %2160 = vmatprep.subr.mxu0 0.0
    %2161 = vmatpush1.msra.mxu0 0.0
    %2162 = vmatprep.subr.mxu0 0.0
    %2163 = vmatpush1.msra.mxu0 0.0
    %2164 = vmatprep.subr.mxu0 0.0
    %2165 = vmatpush1.msra.mxu0 0.0
    %2166 = vmatprep.mubr.f32.mxu0 0.0
    %2167 = vmatmul.mubr.f32.gmra.mrb[0].mxu0 %v2030
    %v2168 = vpop.f32.mrb[0].mxu0
    %v2169 = vadd.f32 0.0, %v2168
    %v2170 = vpop.f32.mrb[0].mxu0
    %2171 = vdwg.mxu0
    %v2172 = vmul.f32 %v2169, 0.001953125
    %v2173 = vmul.f32 %v2101, %v2101
    %v2174 = vsub.f32 %v2172, %v2173
    %v2175 = vld [vmem:[%s3 + $0x3] sm:$0x1]
    %v2176 = vadd.f32 %v2174, 1e-05
    %v2177 = vrsqrt.pop %v2176
    %v2178 = vmul.f32 %v2175, %v2177
    %v2179 = vld [vmem:[%s4 + $0x3] sm:$0x1]
    %v2180 = vmul.f32 %v2101, %v2178
    %v2181 = vsub.f32 %v2179, %v2180
    %v2182 = vlaneseq
    %v2183 = vshrl.u32 %v2182, 7
    %v2184 = vsub.s32 0, %v2183
    %v2185 = vrot.slane %v2178, %v2184
    %v2186 = vmul.f32 %v2005, %v2185
    %v2187 = vmul.f32 %v2006, %v2185
    %v2188 = vmul.f32 %v2007, %v2185
    %v2189 = vmul.f32 %v2008, %v2185
    %v2190 = vlaneseq
    %v2191 = vshrl.u32 %v2190, 7
    %v2192 = vsub.s32 0, %v2191
    %v2193 = vrot.slane %v2181, %v2192
    %v2194 = vadd.f32 %v2186, %v2193
    %v2195 = vadd.f32 %v2187, %v2193
    %v2196 = vadd.f32 %v2188, %v2193
    %v2197 = vadd.f32 %v2189, %v2193
    %v2198 = vmax.f32 %v2194, 0.0
    %v2199 = vmax.f32 %v2195, 0.0
    %v2200 = vmax.f32 %v2196, 0.0
    %v2201 = vmax.f32 %v2197, 0.0
    %2202 = vst [vmem:[#allocation12] sm:$0xff] %v2198
    %2203 = vst [vmem:[#allocation12 + $0x8] sm:$0xff] %v2199
    %2204 = vst [vmem:[#allocation12 + $0x10] sm:$0xff] %v2200
    %2205 = vst [vmem:[#allocation12 + $0x18] sm:$0xff] %v2201
    // Predicated region
    $region42: #{tpu_custom_call.1} parent=1 // pred_check
      _
    $region43: #{tpu_custom_call.1} parent=1 // pred_check_branch
      %2207 = sbr.rel (0) target = $region45
    $region44: #{tpu_custom_call.1} parent=1 // pred_region
      %s2209 = ssub.s32 512, 512
      %2210 = vsyncadd [#allocation6], %s2209
      %s2211 = sshll.u32 [#allocation12], 4
      %s2212 = int_to_ptr.vmem [resolvable:$true] %s2211
      %2217 = dma.vmem_to_hbm [thread:$0]  %s2212, 512, %s6, [#allocation6], 128, 128, 8
    $region45: #{tpu_custom_call.1} parent=1 // pred_fallthru
      _
    // Predicated region
    $region46: #{tpu_custom_call.1} parent=1 // pred_check
      _
    $region47: #{tpu_custom_call.1} parent=1 // pred_check_branch
      %2219 = sbr.rel (0) target = $region49
    $region48: #{tpu_custom_call.1} parent=1 // pred_region
      %2220 = dma.done [#allocation6], 512
    $region49: #{tpu_custom_call.1} parent=1 // pred_fallthru
      _
    %2221 = vsyncpa [#allocation5], 1
    %2222 = vsyncpa [#allocation8], 1
    %2223 = vsyncpa [#allocation11], 1
    %2224 = vsyncpa [#allocation6], 1

</llo_original>
